<compile_context>
chip_gen: v6e
topology: v6e:2x2x1
jax: 0.10.0
libtpu: 0.0.40
codegen_flags: <defaults>
</compile_context>

<pallas_src>
import functools

import jax
import jax.numpy as jnp
from jax.experimental import pallas as pl

# ----------------------------- configuration --------------------------------
VOCAB = 52            # len(dicts['w2ind']) + 2
EMBED = 32            # args.embed_size == word_rep.feature_size
FILTER_SIZES = (3, 5) # args.filter_size = "3,5"
NUM_FILTER_MAPS = 16  # args.num_filter_maps
Y = 8                 # number of labels
B, L = 2, 16          # batch, sequence length
BN_EPS = 1e-5


# ----------------------------- fused Pallas kernel ---------------------------
def _fused_kernel(tok_ref, tgt_ref, emb_ref, wb_ref, bb_ref, wsc_ref,
                  wr1_ref, wr2_ref, wh_ref, bfin_ref, logits_ref, loss_ref,
                  *, batch, seq, vocab, labels, kmax):
    """Whole MultiResCNN forward (full batch) in one kernel invocation.

    Inputs (refs, in order):
      tok_ref  : (B*L, 1)        int32  token ids (flattened batch-major)
      tgt_ref  : (B, Y)          f32    multi-label targets
      emb_ref  : (V, E)          bf16   embedding table (row 0 = padding = 0)
      wb_ref   : (Kmax, E, 2E)   bf16   fused base-conv taps (fs=3 zero-padded to Kmax)
      bb_ref   : (1, 2E)         f32    fused base-conv bias
      wsc_ref  : (2E, 2F)        bf16   block-diag shortcut 1x1 conv (BN scale folded)
      wr1_ref  : (Kmax, 2E, 2F)  bf16   block-diag residual conv1 taps (BN folded)
      wr2_ref  : (Kmax, 2F, 2F)  bf16   block-diag residual conv2 taps (BN folded)
      wh_ref   : (2F, 2Y)        bf16   [U.weight^T | final.weight^T]
      bfin_ref : (1, Y)          f32    final.bias
    Outputs: logits_ref (B, Y) f32, loss_ref (1, 1) f32.
    """
    n = batch * seq
    pmax = kmax // 2

    # --- WordRep: embedding gather as an exact one-hot selection on the MXU ----
    tok = tok_ref[...]                                              # (N, 1) i32
    onehot = (jax.lax.broadcasted_iota(jnp.int32, (n, vocab), 1)
              == tok).astype(jnp.bfloat16)                          # (N, V)
    x = jnp.dot(onehot, emb_ref[...],
                preferred_element_type=jnp.float32)                 # (N, E) f32

    # Position of each row inside its sequence; masks both the conv 'same'
    # zero-padding and the batch boundary for shifted taps.
    pos = jax.lax.broadcasted_iota(jnp.int32, (n, 1), 0) % seq      # (N, 1)

    def conv(src, w_ref):
        """Fused-channel 'same' Conv1d: sum_d mask_d(shift_d(src)) @ W[tap d]."""
        acc = None
        for j in range(kmax):
            d = j - pmax                                            # tap offset
            if d == 0:
                tap = src
            else:
                # rows r of `rolled` hold src[r + d]; wrapped / cross-sequence
                # rows are exactly the rows the padding mask zeroes out.
                rolled = jnp.roll(src, -d, axis=0)
                valid = (pos < seq - d) if d > 0 else (pos >= -d)
                tap = jnp.where(valid, rolled, 0.0)
            term = jnp.dot(tap.astype(jnp.bfloat16), w_ref[j],
                           preferred_element_type=jnp.float32)
            acc = term if acc is None else acc + term
        return acc

    # --- base conv (both channels fused along N) + bias + tanh -----------------
    t0 = jnp.tanh(conv(x, wb_ref) + bb_ref[...])                    # (N, 2E) f32

    # --- residual block (both channels, block-diagonal weights) ----------------
    # Fresh-stats BatchNorm shifts are identically zero and therefore omitted.
    # TODO(synk): with real trained BN running stats, re-add the per-channel shift
    # rows here (and recompute the folded scales on the host).
    sc = jnp.dot(t0.astype(jnp.bfloat16), wsc_ref[...],
                 preferred_element_type=jnp.float32)                # (N, 2F)
    left = jnp.tanh(conv(t0, wr1_ref))                              # (N, 2F)
    feats = jnp.tanh(conv(left, wr2_ref) + sc)                      # (N, 2F) = concat feats

    # --- OutputLayer: per-label attention head, att | proj fused ---------------
    head = jnp.dot(feats.astype(jnp.bfloat16), wh_ref[...],
                   preferred_element_type=jnp.float32)              # (N, 2Y)
    h3 = head.reshape(batch, seq, 2 * labels)
    att, proj = h3[:, :, :labels], h3[:, :, labels:]
    att = att - jnp.max(att, axis=1, keepdims=True)
    e = jnp.exp(att)
    logits = jnp.sum(e * proj, axis=1) / jnp.sum(e, axis=1) + bfin_ref[...]
    logits_ref[...] = logits                                        # (B, Y)

    # --- BCEWithLogitsLoss (mean reduction, numerically stable form) -----------
    tgt = tgt_ref[...]
    bce = (jnp.maximum(logits, 0.0) - logits * tgt
           + jnp.log(1.0 + jnp.exp(-jnp.abs(logits))))
    loss_ref[...] = jnp.full((1, 1), jnp.mean(bce), jnp.float32)


def _full_spec(shape):
    """BlockSpec covering the whole array (single grid step)."""
    if len(shape) == 2:
        return pl.BlockSpec(shape, lambda i: (0, 0))
    return pl.BlockSpec(shape, lambda i: (0, 0, 0))


# ----------------------------- forward pass ----------------------------------
def multirescnn_forward(tokens, target, params):
    b, l = tokens.shape
    labels = target.shape[1]
    vocab = params["embed"].shape[0]
    kmax = params["w_base"].shape[0]

    # Only remaining host-side op: a trivial int32 reshape of the token ids.
    tok_col = tokens.reshape(b * l, 1).astype(jnp.int32)

    args = [tok_col, target, params["embed"], params["w_base"], params["b_base"],
            params["w_sc"], params["w_r1"], params["w_r2"],
            params["w_head"], params["b_final"]]

    kernel = functools.partial(_fused_kernel, batch=b, seq=l, vocab=vocab,
                               labels=labels, kmax=kmax)

    # TODO(synk): for large batch, move B onto a leading "parallel" grid axis
    # (dimension_semantics) so v7x's second TensorCore is used; at B=2 a single
    # grid step is latency-optimal and total VMEM footprint is a few tens of KiB.
    logits, loss = pl.pallas_call(
        kernel,
        out_shape=(jax.ShapeDtypeStruct((b, labels), jnp.float32),
                   jax.ShapeDtypeStruct((1, 1), jnp.float32)),
        grid=(1,),
        in_specs=[_full_spec(a.shape) for a in args],
        out_specs=[_full_spec((b, labels)), _full_spec((1, 1))],
    )(*args)
    return logits, loss[0, 0]


# ----------------------------- parameter packing ------------------------------
def _xavier(key, shape, fan_in, fan_out):
    limit = (6.0 / (fan_in + fan_out)) ** 0.5
    return jax.random.uniform(key, shape, jnp.float32, -limit, limit)


def _block_diag(blocks):
    rows = sum(blk.shape[0] for blk in blocks)
    cols = sum(blk.shape[1] for blk in blocks)
    out = jnp.zeros((rows, cols), jnp.float32)
    r = c = 0
    for blk in blocks:
        out = out.at[r:r + blk.shape[0], c:c + blk.shape[1]].set(blk)
        r += blk.shape[0]
        c += blk.shape[1]
    return out


def _pack_taps(channel_weights, kmax, block_diag):
    """Stack per-tap fused weights; channel_weights[c] has shape (k_c, Cin_c, Cout_c).

    Shorter filters are zero-padded to kmax taps.  block_diag=False concatenates the
    channel blocks along Cout (shared input, e.g. base conv); block_diag=True places
    them block-diagonally (per-channel inputs, e.g. residual-block convs).
    """
    pmax = kmax // 2
    taps = []
    for j in range(kmax):
        d = j - pmax
        blocks = []
        for w in channel_weights:
            p_c = w.shape[0] // 2
            if -p_c <= d <= p_c:
                blocks.append(w[d + p_c])
            else:
                blocks.append(jnp.zeros(w.shape[1:], w.dtype))
        taps.append(_block_diag(blocks) if block_diag
                    else jnp.concatenate(blocks, axis=1))
    return jnp.stack(taps, axis=0)


def init_params(key):
    keys = iter(jax.random.split(key, 64))
    # Embedding ~ N(0,1), padding row 0 zeroed.  Stored bf16: the gathered rows are
    # only ever consumed as bf16 MXU operands, so this matches "f32 gather, cast at
    # the matmul" exactly.
    embed = jax.random.normal(next(keys), (VOCAB, EMBED), jnp.float32)
    embed = embed.at[0].set(0.0)

    # Fresh-module eval BatchNorm folds to a pure scale (shift = 0); fold the scale
    # into the conv weights on the host.
    bn_scale = 1.0 / (1.0 + BN_EPS) ** 0.5
    kmax = max(FILTER_SIZES)
    E, F = EMBED, NUM_FILTER_MAPS

    base_w, base_b, r1_w, r2_w, rs_w = [], [], [], [], []
    for fs in FILTER_SIZES:
        # Weights generated directly in (K, Cin, Cout) layout (self-consistent with
        # the in-kernel per-tap matmul ordering).
        base_w.append(_xavier(next(keys), (fs, E, E), E * fs, E * fs))
        base_b.append(_xavier(next(keys), (E,), E * fs, 1) * 0.1)
        r1_w.append(_xavier(next(keys), (fs, E, F), E * fs, F * fs) * bn_scale)
        r2_w.append(_xavier(next(keys), (fs, F, F), F * fs, F * fs) * bn_scale)
        rs_w.append(_xavier(next(keys), (E, F), E, F) * bn_scale)

    d_out = len(FILTER_SIZES) * F
    u_w = _xavier(next(keys), (Y, d_out), d_out, Y)
    final_w = _xavier(next(keys), (Y, d_out), d_out, Y)
    final_b = _xavier(next(keys), (Y,), d_out, 1) * 0.1

    return dict(
        embed=embed.astype(jnp.bfloat16),
        w_base=_pack_taps(base_w, kmax, block_diag=False).astype(jnp.bfloat16),
        b_base=jnp.concatenate(base_b).reshape(1, -1),
        w_sc=_block_diag(rs_w).astype(jnp.bfloat16),
        w_r1=_pack_taps(r1_w, kmax, block_diag=True).astype(jnp.bfloat16),
        w_r2=_pack_taps(r2_w, kmax, block_diag=True).astype(jnp.bfloat16),
        w_head=jnp.concatenate([u_w.T, final_w.T], axis=1).astype(jnp.bfloat16),
        b_final=final_b.reshape(1, Y),
    )


# ----------------------------- main -------------------------------------------
if __name__ == "__main__":
    key = jax.random.PRNGKey(0)
    k_par, k_tok, k_tgt = jax.random.split(key, 3)

    params = init_params(k_par)
    tokens = jax.random.randint(k_tok, (B, L), 0, VOCAB, dtype=jnp.int32)
    target = jax.random.bernoulli(k_tgt, 0.3, (B, Y)).astype(jnp.float32)

    logits, loss = jax.jit(multirescnn_forward)(tokens, target, params)
    jax.block_until_ready((logits, loss))

    assert logits.shape == (B, Y), logits.shape
    assert loss.shape == (), loss.shape
    assert bool(jnp.isfinite(loss)), "non-finite loss"
    print("KERNEL_OK")
</pallas_src>

<mosaic_0001>
module attributes {stable_mosaic.version = 11 : i64} {
  func.func @_fused_kernel(%arg0: i32, %arg1: memref<32x1xi32, #tpu.memory_space<vmem>>, %arg2: memref<2x8xf32, #tpu.memory_space<vmem>>, %arg3: memref<52x32xbf16, #tpu.memory_space<vmem>>, %arg4: memref<5x32x64xbf16, #tpu.memory_space<vmem>>, %arg5: memref<1x64xf32, #tpu.memory_space<vmem>>, %arg6: memref<64x32xbf16, #tpu.memory_space<vmem>>, %arg7: memref<5x64x32xbf16, #tpu.memory_space<vmem>>, %arg8: memref<5x32x32xbf16, #tpu.memory_space<vmem>>, %arg9: memref<32x16xbf16, #tpu.memory_space<vmem>>, %arg10: memref<1x8xf32, #tpu.memory_space<vmem>>, %arg11: memref<2x8xf32, #tpu.memory_space<vmem>>, %arg12: memref<1x1xf32, #tpu.memory_space<vmem>>) attributes {dimension_semantics = [#tpu.dimension_semantics<arbitrary>], iteration_bounds = array<i64: 1>, scalar_prefetch = 0 : i64, scratch_operands = 0 : i64, tpu.core_type = #tpu.core_type<tc>, window_params = [{pipeline_mode = #tpu.pipeline_mode<synchronous>, transform_indices = @transform_0, window_bounds = array<i64: 32, 1>}, {pipeline_mode = #tpu.pipeline_mode<synchronous>, transform_indices = @transform_1, window_bounds = array<i64: 2, 8>}, {pipeline_mode = #tpu.pipeline_mode<synchronous>, transform_indices = @transform_2, window_bounds = array<i64: 52, 32>}, {pipeline_mode = #tpu.pipeline_mode<synchronous>, transform_indices = @transform_3, window_bounds = array<i64: 5, 32, 64>}, {pipeline_mode = #tpu.pipeline_mode<synchronous>, transform_indices = @transform_4, window_bounds = array<i64: 1, 64>}, {pipeline_mode = #tpu.pipeline_mode<synchronous>, transform_indices = @transform_5, window_bounds = array<i64: 64, 32>}, {pipeline_mode = #tpu.pipeline_mode<synchronous>, transform_indices = @transform_6, window_bounds = array<i64: 5, 64, 32>}, {pipeline_mode = #tpu.pipeline_mode<synchronous>, transform_indices = @transform_7, window_bounds = array<i64: 5, 32, 32>}, {pipeline_mode = #tpu.pipeline_mode<synchronous>, transform_indices = @transform_8, window_bounds = array<i64: 32, 16>}, {pipeline_mode = #tpu.pipeline_mode<synchronous>, transform_indices = @transform_9, window_bounds = array<i64: 1, 8>}, {pipeline_mode = #tpu.pipeline_mode<synchronous>, transform_indices = @transform_10, window_bounds = array<i64: 2, 8>}, {pipeline_mode = #tpu.pipeline_mode<synchronous>, transform_indices = @transform_11, window_bounds = array<i64: 1, 1>}]} {
    %c0 = arith.constant 0 : index
    %c0_0 = arith.constant 0 : index
    %0 = vector.load %arg1[%c0, %c0_0] : memref<32x1xi32, #tpu.memory_space<vmem>>, vector<32x1xi32>
    %1 = tpu.iota {dimensions = array<i32: 1>} : vector<32x52xi32>
    %2 = vector.broadcast %0 : vector<32x1xi32> to vector<32x52xi32>
    %3 = arith.cmpi eq, %1, %2 : vector<32x52xi32>
    %4 = arith.extui %3 : vector<32x52xi1> to vector<32x52xi32>
    %5 = arith.sitofp %4 : vector<32x52xi32> to vector<32x52xf32>
    %6 = arith.truncf %5 : vector<32x52xf32> to vector<32x52xbf16>
    %c0_1 = arith.constant 0 : index
    %c0_2 = arith.constant 0 : index
    %7 = vector.load %arg3[%c0_1, %c0_2] : memref<52x32xbf16, #tpu.memory_space<vmem>>, vector<52x32xbf16>
    %cst = arith.constant dense<0.000000e+00> : vector<32x32xf32>
    %8 = tpu.matmul %6, %7, %cst {dimension_numbers = #tpu.dot_dimension_numbers<[1], [0], [0], [1], [0, 0, 1, 1], [], []>} : vector<32x52xbf16>, vector<52x32xbf16>, vector<32x32xf32> -> vector<32x32xf32>
    %9 = tpu.iota {dimensions = array<i32: 0>} : vector<32x1xi32>
    %c16_i32 = arith.constant 16 : i32
    %c0_i32 = arith.constant 0 : i32
    %10 = arith.cmpi eq, %c16_i32, %c0_i32 : i32
    %c1_i32 = arith.constant 1 : i32
    %11 = arith.select %10, %c1_i32, %c16_i32 : i32
    %12 = vector.broadcast %11 : i32 to vector<32x1xi32>
    %13 = arith.remsi %9, %12 : vector<32x1xi32>
    %c0_i32_3 = arith.constant 0 : i32
    %14 = vector.broadcast %c0_i32_3 : i32 to vector<32x1xi32>
    %15 = arith.cmpi ne, %13, %14 : vector<32x1xi32>
    %c0_i32_4 = arith.constant 0 : i32
    %16 = vector.broadcast %c0_i32_4 : i32 to vector<32x1xi32>
    %17 = arith.cmpi slt, %13, %16 : vector<32x1xi32>
    %c0_i32_5 = arith.constant 0 : i32
    %18 = arith.cmpi slt, %11, %c0_i32_5 : i32
    %19 = vector.broadcast %18 : i1 to vector<32x1xi1>
    %20 = vector.broadcast %19 : vector<32x1xi1> to vector<32x1xi1>
    %21 = arith.xori %17, %20 : vector<32x1xi1>
    %22 = arith.andi %21, %15 : vector<32x1xi1>
    %23 = vector.broadcast %11 : i32 to vector<32x1xi32>
    %24 = arith.addi %13, %23 : vector<32x1xi32>
    %25 = arith.select %22, %24, %13 : vector<32x1xi1>, vector<32x1xi32>
    %26 = vector.extract_strided_slice %8 {offsets = [30, 0], sizes = [2, 32], strides = [1, 1]} : vector<32x32xf32> to vector<2x32xf32>
    %27 = vector.extract_strided_slice %8 {offsets = [0, 0], sizes = [30, 32], strides = [1, 1]} : vector<32x32xf32> to vector<30x32xf32>
    %28 = tpu.concatenate %26, %27 in 0 : vector<2x32xf32>, vector<30x32xf32> -> vector<32x32xf32>
    %c2_i32 = arith.constant 2 : i32
    %29 = vector.broadcast %c2_i32 : i32 to vector<32x1xi32>
    %30 = arith.cmpi sge, %25, %29 : vector<32x1xi32>
    %cst_6 = arith.constant 0.000000e+00 : f32
    %31 = vector.shape_cast %30 : vector<32x1xi1> to vector<32x1xi1>
    %32 = vector.broadcast %31 : vector<32x1xi1> to vector<32x32xi1>
    %33 = vector.broadcast %cst_6 : f32 to vector<32x32xf32>
    %34 = arith.select %32, %28, %33 : vector<32x32xi1>, vector<32x32xf32>
    %35 = arith.truncf %34 : vector<32x32xf32> to vector<32x32xbf16>
    %c0_7 = arith.constant 0 : index
    %c0_8 = arith.constant 0 : index
    %c0_9 = arith.constant 0 : index
    %36 = vector.load %arg4[%c0_7, %c0_8, %c0_9] : memref<5x32x64xbf16, #tpu.memory_space<vmem>>, vector<1x32x64xbf16>
    %37 = vector.shape_cast %36 : vector<1x32x64xbf16> to vector<32x64xbf16>
    %cst_10 = arith.constant dense<0.000000e+00> : vector<32x64xf32>
    %38 = tpu.matmul %35, %37, %cst_10 {dimension_numbers = #tpu.dot_dimension_numbers<[1], [0], [0], [1], [0, 0, 1, 1], [], []>} : vector<32x32xbf16>, vector<32x64xbf16>, vector<32x64xf32> -> vector<32x64xf32>
    %39 = vector.extract_strided_slice %8 {offsets = [31, 0], sizes = [1, 32], strides = [1, 1]} : vector<32x32xf32> to vector<1x32xf32>
    %40 = vector.extract_strided_slice %8 {offsets = [0, 0], sizes = [31, 32], strides = [1, 1]} : vector<32x32xf32> to vector<31x32xf32>
    %41 = tpu.concatenate %39, %40 in 0 : vector<1x32xf32>, vector<31x32xf32> -> vector<32x32xf32>
    %c1_i32_11 = arith.constant 1 : i32
    %42 = vector.broadcast %c1_i32_11 : i32 to vector<32x1xi32>
    %43 = arith.cmpi sge, %25, %42 : vector<32x1xi32>
    %cst_12 = arith.constant 0.000000e+00 : f32
    %44 = vector.shape_cast %43 : vector<32x1xi1> to vector<32x1xi1>
    %45 = vector.broadcast %44 : vector<32x1xi1> to vector<32x32xi1>
    %46 = vector.broadcast %cst_12 : f32 to vector<32x32xf32>
    %47 = arith.select %45, %41, %46 : vector<32x32xi1>, vector<32x32xf32>
    %48 = arith.truncf %47 : vector<32x32xf32> to vector<32x32xbf16>
    %c1 = arith.constant 1 : index
    %c0_13 = arith.constant 0 : index
    %c0_14 = arith.constant 0 : index
    %49 = vector.load %arg4[%c1, %c0_13, %c0_14] : memref<5x32x64xbf16, #tpu.memory_space<vmem>>, vector<1x32x64xbf16>
    %50 = vector.shape_cast %49 : vector<1x32x64xbf16> to vector<32x64xbf16>
    %cst_15 = arith.constant dense<0.000000e+00> : vector<32x64xf32>
    %51 = tpu.matmul %48, %50, %cst_15 {dimension_numbers = #tpu.dot_dimension_numbers<[1], [0], [0], [1], [0, 0, 1, 1], [], []>} : vector<32x32xbf16>, vector<32x64xbf16>, vector<32x64xf32> -> vector<32x64xf32>
    %52 = arith.addf %38, %51 : vector<32x64xf32>
    %53 = arith.truncf %8 : vector<32x32xf32> to vector<32x32xbf16>
    %c2 = arith.constant 2 : index
    %c0_16 = arith.constant 0 : index
    %c0_17 = arith.constant 0 : index
    %54 = vector.load %arg4[%c2, %c0_16, %c0_17] : memref<5x32x64xbf16, #tpu.memory_space<vmem>>, vector<1x32x64xbf16>
    %55 = vector.shape_cast %54 : vector<1x32x64xbf16> to vector<32x64xbf16>
    %cst_18 = arith.constant dense<0.000000e+00> : vector<32x64xf32>
    %56 = tpu.matmul %53, %55, %cst_18 {dimension_numbers = #tpu.dot_dimension_numbers<[1], [0], [0], [1], [0, 0, 1, 1], [], []>} : vector<32x32xbf16>, vector<32x64xbf16>, vector<32x64xf32> -> vector<32x64xf32>
    %57 = arith.addf %52, %56 : vector<32x64xf32>
    %58 = vector.extract_strided_slice %8 {offsets = [1, 0], sizes = [31, 32], strides = [1, 1]} : vector<32x32xf32> to vector<31x32xf32>
    %59 = vector.extract_strided_slice %8 {offsets = [0, 0], sizes = [1, 32], strides = [1, 1]} : vector<32x32xf32> to vector<1x32xf32>
    %60 = tpu.concatenate %58, %59 in 0 : vector<31x32xf32>, vector<1x32xf32> -> vector<32x32xf32>
    %c15_i32 = arith.constant 15 : i32
    %61 = vector.broadcast %c15_i32 : i32 to vector<32x1xi32>
    %62 = arith.cmpi slt, %25, %61 : vector<32x1xi32>
    %cst_19 = arith.constant 0.000000e+00 : f32
    %63 = vector.shape_cast %62 : vector<32x1xi1> to vector<32x1xi1>
    %64 = vector.broadcast %63 : vector<32x1xi1> to vector<32x32xi1>
    %65 = vector.broadcast %cst_19 : f32 to vector<32x32xf32>
    %66 = arith.select %64, %60, %65 : vector<32x32xi1>, vector<32x32xf32>
    %67 = arith.truncf %66 : vector<32x32xf32> to vector<32x32xbf16>
    %c3 = arith.constant 3 : index
    %c0_20 = arith.constant 0 : index
    %c0_21 = arith.constant 0 : index
    %68 = vector.load %arg4[%c3, %c0_20, %c0_21] : memref<5x32x64xbf16, #tpu.memory_space<vmem>>, vector<1x32x64xbf16>
    %69 = vector.shape_cast %68 : vector<1x32x64xbf16> to vector<32x64xbf16>
    %cst_22 = arith.constant dense<0.000000e+00> : vector<32x64xf32>
    %70 = tpu.matmul %67, %69, %cst_22 {dimension_numbers = #tpu.dot_dimension_numbers<[1], [0], [0], [1], [0, 0, 1, 1], [], []>} : vector<32x32xbf16>, vector<32x64xbf16>, vector<32x64xf32> -> vector<32x64xf32>
    %71 = arith.addf %57, %70 : vector<32x64xf32>
    %72 = vector.extract_strided_slice %8 {offsets = [2, 0], sizes = [30, 32], strides = [1, 1]} : vector<32x32xf32> to vector<30x32xf32>
    %73 = vector.extract_strided_slice %8 {offsets = [0, 0], sizes = [2, 32], strides = [1, 1]} : vector<32x32xf32> to vector<2x32xf32>
    %74 = tpu.concatenate %72, %73 in 0 : vector<30x32xf32>, vector<2x32xf32> -> vector<32x32xf32>
    %c14_i32 = arith.constant 14 : i32
    %75 = vector.broadcast %c14_i32 : i32 to vector<32x1xi32>
    %76 = arith.cmpi slt, %25, %75 : vector<32x1xi32>
    %cst_23 = arith.constant 0.000000e+00 : f32
    %77 = vector.shape_cast %76 : vector<32x1xi1> to vector<32x1xi1>
    %78 = vector.broadcast %77 : vector<32x1xi1> to vector<32x32xi1>
    %79 = vector.broadcast %cst_23 : f32 to vector<32x32xf32>
    %80 = arith.select %78, %74, %79 : vector<32x32xi1>, vector<32x32xf32>
    %81 = arith.truncf %80 : vector<32x32xf32> to vector<32x32xbf16>
    %c4 = arith.constant 4 : index
    %c0_24 = arith.constant 0 : index
    %c0_25 = arith.constant 0 : index
    %82 = vector.load %arg4[%c4, %c0_24, %c0_25] : memref<5x32x64xbf16, #tpu.memory_space<vmem>>, vector<1x32x64xbf16>
    %83 = vector.shape_cast %82 : vector<1x32x64xbf16> to vector<32x64xbf16>
    %cst_26 = arith.constant dense<0.000000e+00> : vector<32x64xf32>
    %84 = tpu.matmul %81, %83, %cst_26 {dimension_numbers = #tpu.dot_dimension_numbers<[1], [0], [0], [1], [0, 0, 1, 1], [], []>} : vector<32x32xbf16>, vector<32x64xbf16>, vector<32x64xf32> -> vector<32x64xf32>
    %85 = arith.addf %71, %84 : vector<32x64xf32>
    %c0_27 = arith.constant 0 : index
    %c0_28 = arith.constant 0 : index
    %86 = vector.load %arg5[%c0_27, %c0_28] : memref<1x64xf32, #tpu.memory_space<vmem>>, vector<1x64xf32>
    %87 = vector.broadcast %86 : vector<1x64xf32> to vector<32x64xf32>
    %88 = arith.addf %85, %87 : vector<32x64xf32>
    %89 = math.tanh %88 : vector<32x64xf32>
    %90 = arith.truncf %89 : vector<32x64xf32> to vector<32x64xbf16>
    %c0_29 = arith.constant 0 : index
    %c0_30 = arith.constant 0 : index
    %91 = vector.load %arg6[%c0_29, %c0_30] : memref<64x32xbf16, #tpu.memory_space<vmem>>, vector<64x32xbf16>
    %cst_31 = arith.constant dense<0.000000e+00> : vector<32x32xf32>
    %92 = tpu.matmul %90, %91, %cst_31 {dimension_numbers = #tpu.dot_dimension_numbers<[1], [0], [0], [1], [0, 0, 1, 1], [], []>} : vector<32x64xbf16>, vector<64x32xbf16>, vector<32x32xf32> -> vector<32x32xf32>
    %93 = vector.extract_strided_slice %89 {offsets = [30, 0], sizes = [2, 64], strides = [1, 1]} : vector<32x64xf32> to vector<2x64xf32>
    %94 = vector.extract_strided_slice %89 {offsets = [0, 0], sizes = [30, 64], strides = [1, 1]} : vector<32x64xf32> to vector<30x64xf32>
    %95 = tpu.concatenate %93, %94 in 0 : vector<2x64xf32>, vector<30x64xf32> -> vector<32x64xf32>
    %c2_i32_32 = arith.constant 2 : i32
    %96 = vector.broadcast %c2_i32_32 : i32 to vector<32x1xi32>
    %97 = arith.cmpi sge, %25, %96 : vector<32x1xi32>
    %cst_33 = arith.constant 0.000000e+00 : f32
    %98 = vector.shape_cast %97 : vector<32x1xi1> to vector<32x1xi1>
    %99 = vector.broadcast %98 : vector<32x1xi1> to vector<32x64xi1>
    %100 = vector.broadcast %cst_33 : f32 to vector<32x64xf32>
    %101 = arith.select %99, %95, %100 : vector<32x64xi1>, vector<32x64xf32>
    %102 = arith.truncf %101 : vector<32x64xf32> to vector<32x64xbf16>
    %c0_34 = arith.constant 0 : index
    %c0_35 = arith.constant 0 : index
    %c0_36 = arith.constant 0 : index
    %103 = vector.load %arg7[%c0_34, %c0_35, %c0_36] : memref<5x64x32xbf16, #tpu.memory_space<vmem>>, vector<1x64x32xbf16>
    %104 = vector.shape_cast %103 : vector<1x64x32xbf16> to vector<64x32xbf16>
    %cst_37 = arith.constant dense<0.000000e+00> : vector<32x32xf32>
    %105 = tpu.matmul %102, %104, %cst_37 {dimension_numbers = #tpu.dot_dimension_numbers<[1], [0], [0], [1], [0, 0, 1, 1], [], []>} : vector<32x64xbf16>, vector<64x32xbf16>, vector<32x32xf32> -> vector<32x32xf32>
    %106 = vector.extract_strided_slice %89 {offsets = [31, 0], sizes = [1, 64], strides = [1, 1]} : vector<32x64xf32> to vector<1x64xf32>
    %107 = vector.extract_strided_slice %89 {offsets = [0, 0], sizes = [31, 64], strides = [1, 1]} : vector<32x64xf32> to vector<31x64xf32>
    %108 = tpu.concatenate %106, %107 in 0 : vector<1x64xf32>, vector<31x64xf32> -> vector<32x64xf32>
    %c1_i32_38 = arith.constant 1 : i32
    %109 = vector.broadcast %c1_i32_38 : i32 to vector<32x1xi32>
    %110 = arith.cmpi sge, %25, %109 : vector<32x1xi32>
    %cst_39 = arith.constant 0.000000e+00 : f32
    %111 = vector.shape_cast %110 : vector<32x1xi1> to vector<32x1xi1>
    %112 = vector.broadcast %111 : vector<32x1xi1> to vector<32x64xi1>
    %113 = vector.broadcast %cst_39 : f32 to vector<32x64xf32>
    %114 = arith.select %112, %108, %113 : vector<32x64xi1>, vector<32x64xf32>
    %115 = arith.truncf %114 : vector<32x64xf32> to vector<32x64xbf16>
    %c1_40 = arith.constant 1 : index
    %c0_41 = arith.constant 0 : index
    %c0_42 = arith.constant 0 : index
    %116 = vector.load %arg7[%c1_40, %c0_41, %c0_42] : memref<5x64x32xbf16, #tpu.memory_space<vmem>>, vector<1x64x32xbf16>
    %117 = vector.shape_cast %116 : vector<1x64x32xbf16> to vector<64x32xbf16>
    %cst_43 = arith.constant dense<0.000000e+00> : vector<32x32xf32>
    %118 = tpu.matmul %115, %117, %cst_43 {dimension_numbers = #tpu.dot_dimension_numbers<[1], [0], [0], [1], [0, 0, 1, 1], [], []>} : vector<32x64xbf16>, vector<64x32xbf16>, vector<32x32xf32> -> vector<32x32xf32>
    %119 = arith.addf %105, %118 : vector<32x32xf32>
    %120 = arith.truncf %89 : vector<32x64xf32> to vector<32x64xbf16>
    %c2_44 = arith.constant 2 : index
    %c0_45 = arith.constant 0 : index
    %c0_46 = arith.constant 0 : index
    %121 = vector.load %arg7[%c2_44, %c0_45, %c0_46] : memref<5x64x32xbf16, #tpu.memory_space<vmem>>, vector<1x64x32xbf16>
    %122 = vector.shape_cast %121 : vector<1x64x32xbf16> to vector<64x32xbf16>
    %cst_47 = arith.constant dense<0.000000e+00> : vector<32x32xf32>
    %123 = tpu.matmul %120, %122, %cst_47 {dimension_numbers = #tpu.dot_dimension_numbers<[1], [0], [0], [1], [0, 0, 1, 1], [], []>} : vector<32x64xbf16>, vector<64x32xbf16>, vector<32x32xf32> -> vector<32x32xf32>
    %124 = arith.addf %119, %123 : vector<32x32xf32>
    %125 = vector.extract_strided_slice %89 {offsets = [1, 0], sizes = [31, 64], strides = [1, 1]} : vector<32x64xf32> to vector<31x64xf32>
    %126 = vector.extract_strided_slice %89 {offsets = [0, 0], sizes = [1, 64], strides = [1, 1]} : vector<32x64xf32> to vector<1x64xf32>
    %127 = tpu.concatenate %125, %126 in 0 : vector<31x64xf32>, vector<1x64xf32> -> vector<32x64xf32>
    %c15_i32_48 = arith.constant 15 : i32
    %128 = vector.broadcast %c15_i32_48 : i32 to vector<32x1xi32>
    %129 = arith.cmpi slt, %25, %128 : vector<32x1xi32>
    %cst_49 = arith.constant 0.000000e+00 : f32
    %130 = vector.shape_cast %129 : vector<32x1xi1> to vector<32x1xi1>
    %131 = vector.broadcast %130 : vector<32x1xi1> to vector<32x64xi1>
    %132 = vector.broadcast %cst_49 : f32 to vector<32x64xf32>
    %133 = arith.select %131, %127, %132 : vector<32x64xi1>, vector<32x64xf32>
    %134 = arith.truncf %133 : vector<32x64xf32> to vector<32x64xbf16>
    %c3_50 = arith.constant 3 : index
    %c0_51 = arith.constant 0 : index
    %c0_52 = arith.constant 0 : index
    %135 = vector.load %arg7[%c3_50, %c0_51, %c0_52] : memref<5x64x32xbf16, #tpu.memory_space<vmem>>, vector<1x64x32xbf16>
    %136 = vector.shape_cast %135 : vector<1x64x32xbf16> to vector<64x32xbf16>
    %cst_53 = arith.constant dense<0.000000e+00> : vector<32x32xf32>
    %137 = tpu.matmul %134, %136, %cst_53 {dimension_numbers = #tpu.dot_dimension_numbers<[1], [0], [0], [1], [0, 0, 1, 1], [], []>} : vector<32x64xbf16>, vector<64x32xbf16>, vector<32x32xf32> -> vector<32x32xf32>
    %138 = arith.addf %124, %137 : vector<32x32xf32>
    %139 = vector.extract_strided_slice %89 {offsets = [2, 0], sizes = [30, 64], strides = [1, 1]} : vector<32x64xf32> to vector<30x64xf32>
    %140 = vector.extract_strided_slice %89 {offsets = [0, 0], sizes = [2, 64], strides = [1, 1]} : vector<32x64xf32> to vector<2x64xf32>
    %141 = tpu.concatenate %139, %140 in 0 : vector<30x64xf32>, vector<2x64xf32> -> vector<32x64xf32>
    %c14_i32_54 = arith.constant 14 : i32
    %142 = vector.broadcast %c14_i32_54 : i32 to vector<32x1xi32>
    %143 = arith.cmpi slt, %25, %142 : vector<32x1xi32>
    %cst_55 = arith.constant 0.000000e+00 : f32
    %144 = vector.shape_cast %143 : vector<32x1xi1> to vector<32x1xi1>
    %145 = vector.broadcast %144 : vector<32x1xi1> to vector<32x64xi1>
    %146 = vector.broadcast %cst_55 : f32 to vector<32x64xf32>
    %147 = arith.select %145, %141, %146 : vector<32x64xi1>, vector<32x64xf32>
    %148 = arith.truncf %147 : vector<32x64xf32> to vector<32x64xbf16>
    %c4_56 = arith.constant 4 : index
    %c0_57 = arith.constant 0 : index
    %c0_58 = arith.constant 0 : index
    %149 = vector.load %arg7[%c4_56, %c0_57, %c0_58] : memref<5x64x32xbf16, #tpu.memory_space<vmem>>, vector<1x64x32xbf16>
    %150 = vector.shape_cast %149 : vector<1x64x32xbf16> to vector<64x32xbf16>
    %cst_59 = arith.constant dense<0.000000e+00> : vector<32x32xf32>
    %151 = tpu.matmul %148, %150, %cst_59 {dimension_numbers = #tpu.dot_dimension_numbers<[1], [0], [0], [1], [0, 0, 1, 1], [], []>} : vector<32x64xbf16>, vector<64x32xbf16>, vector<32x32xf32> -> vector<32x32xf32>
    %152 = arith.addf %138, %151 : vector<32x32xf32>
    %153 = math.tanh %152 : vector<32x32xf32>
    %154 = vector.extract_strided_slice %153 {offsets = [30, 0], sizes = [2, 32], strides = [1, 1]} : vector<32x32xf32> to vector<2x32xf32>
    %155 = vector.extract_strided_slice %153 {offsets = [0, 0], sizes = [30, 32], strides = [1, 1]} : vector<32x32xf32> to vector<30x32xf32>
    %156 = tpu.concatenate %154, %155 in 0 : vector<2x32xf32>, vector<30x32xf32> -> vector<32x32xf32>
    %c2_i32_60 = arith.constant 2 : i32
    %157 = vector.broadcast %c2_i32_60 : i32 to vector<32x1xi32>
    %158 = arith.cmpi sge, %25, %157 : vector<32x1xi32>
    %cst_61 = arith.constant 0.000000e+00 : f32
    %159 = vector.shape_cast %158 : vector<32x1xi1> to vector<32x1xi1>
    %160 = vector.broadcast %159 : vector<32x1xi1> to vector<32x32xi1>
    %161 = vector.broadcast %cst_61 : f32 to vector<32x32xf32>
    %162 = arith.select %160, %156, %161 : vector<32x32xi1>, vector<32x32xf32>
    %163 = arith.truncf %162 : vector<32x32xf32> to vector<32x32xbf16>
    %c0_62 = arith.constant 0 : index
    %c0_63 = arith.constant 0 : index
    %c0_64 = arith.constant 0 : index
    %164 = vector.load %arg8[%c0_62, %c0_63, %c0_64] : memref<5x32x32xbf16, #tpu.memory_space<vmem>>, vector<1x32x32xbf16>
    %165 = vector.shape_cast %164 : vector<1x32x32xbf16> to vector<32x32xbf16>
    %cst_65 = arith.constant dense<0.000000e+00> : vector<32x32xf32>
    %166 = tpu.matmul %163, %165, %cst_65 {dimension_numbers = #tpu.dot_dimension_numbers<[1], [0], [0], [1], [0, 0, 1, 1], [], []>} : vector<32x32xbf16>, vector<32x32xbf16>, vector<32x32xf32> -> vector<32x32xf32>
    %167 = vector.extract_strided_slice %153 {offsets = [31, 0], sizes = [1, 32], strides = [1, 1]} : vector<32x32xf32> to vector<1x32xf32>
    %168 = vector.extract_strided_slice %153 {offsets = [0, 0], sizes = [31, 32], strides = [1, 1]} : vector<32x32xf32> to vector<31x32xf32>
    %169 = tpu.concatenate %167, %168 in 0 : vector<1x32xf32>, vector<31x32xf32> -> vector<32x32xf32>
    %c1_i32_66 = arith.constant 1 : i32
    %170 = vector.broadcast %c1_i32_66 : i32 to vector<32x1xi32>
    %171 = arith.cmpi sge, %25, %170 : vector<32x1xi32>
    %cst_67 = arith.constant 0.000000e+00 : f32
    %172 = vector.shape_cast %171 : vector<32x1xi1> to vector<32x1xi1>
    %173 = vector.broadcast %172 : vector<32x1xi1> to vector<32x32xi1>
    %174 = vector.broadcast %cst_67 : f32 to vector<32x32xf32>
    %175 = arith.select %173, %169, %174 : vector<32x32xi1>, vector<32x32xf32>
    %176 = arith.truncf %175 : vector<32x32xf32> to vector<32x32xbf16>
    %c1_68 = arith.constant 1 : index
    %c0_69 = arith.constant 0 : index
    %c0_70 = arith.constant 0 : index
    %177 = vector.load %arg8[%c1_68, %c0_69, %c0_70] : memref<5x32x32xbf16, #tpu.memory_space<vmem>>, vector<1x32x32xbf16>
    %178 = vector.shape_cast %177 : vector<1x32x32xbf16> to vector<32x32xbf16>
    %cst_71 = arith.constant dense<0.000000e+00> : vector<32x32xf32>
    %179 = tpu.matmul %176, %178, %cst_71 {dimension_numbers = #tpu.dot_dimension_numbers<[1], [0], [0], [1], [0, 0, 1, 1], [], []>} : vector<32x32xbf16>, vector<32x32xbf16>, vector<32x32xf32> -> vector<32x32xf32>
    %180 = arith.addf %166, %179 : vector<32x32xf32>
    %181 = arith.truncf %153 : vector<32x32xf32> to vector<32x32xbf16>
    %c2_72 = arith.constant 2 : index
    %c0_73 = arith.constant 0 : index
    %c0_74 = arith.constant 0 : index
    %182 = vector.load %arg8[%c2_72, %c0_73, %c0_74] : memref<5x32x32xbf16, #tpu.memory_space<vmem>>, vector<1x32x32xbf16>
    %183 = vector.shape_cast %182 : vector<1x32x32xbf16> to vector<32x32xbf16>
    %cst_75 = arith.constant dense<0.000000e+00> : vector<32x32xf32>
    %184 = tpu.matmul %181, %183, %cst_75 {dimension_numbers = #tpu.dot_dimension_numbers<[1], [0], [0], [1], [0, 0, 1, 1], [], []>} : vector<32x32xbf16>, vector<32x32xbf16>, vector<32x32xf32> -> vector<32x32xf32>
    %185 = arith.addf %180, %184 : vector<32x32xf32>
    %186 = vector.extract_strided_slice %153 {offsets = [1, 0], sizes = [31, 32], strides = [1, 1]} : vector<32x32xf32> to vector<31x32xf32>
    %187 = vector.extract_strided_slice %153 {offsets = [0, 0], sizes = [1, 32], strides = [1, 1]} : vector<32x32xf32> to vector<1x32xf32>
    %188 = tpu.concatenate %186, %187 in 0 : vector<31x32xf32>, vector<1x32xf32> -> vector<32x32xf32>
    %c15_i32_76 = arith.constant 15 : i32
    %189 = vector.broadcast %c15_i32_76 : i32 to vector<32x1xi32>
    %190 = arith.cmpi slt, %25, %189 : vector<32x1xi32>
    %cst_77 = arith.constant 0.000000e+00 : f32
    %191 = vector.shape_cast %190 : vector<32x1xi1> to vector<32x1xi1>
    %192 = vector.broadcast %191 : vector<32x1xi1> to vector<32x32xi1>
    %193 = vector.broadcast %cst_77 : f32 to vector<32x32xf32>
    %194 = arith.select %192, %188, %193 : vector<32x32xi1>, vector<32x32xf32>
    %195 = arith.truncf %194 : vector<32x32xf32> to vector<32x32xbf16>
    %c3_78 = arith.constant 3 : index
    %c0_79 = arith.constant 0 : index
    %c0_80 = arith.constant 0 : index
    %196 = vector.load %arg8[%c3_78, %c0_79, %c0_80] : memref<5x32x32xbf16, #tpu.memory_space<vmem>>, vector<1x32x32xbf16>
    %197 = vector.shape_cast %196 : vector<1x32x32xbf16> to vector<32x32xbf16>
    %cst_81 = arith.constant dense<0.000000e+00> : vector<32x32xf32>
    %198 = tpu.matmul %195, %197, %cst_81 {dimension_numbers = #tpu.dot_dimension_numbers<[1], [0], [0], [1], [0, 0, 1, 1], [], []>} : vector<32x32xbf16>, vector<32x32xbf16>, vector<32x32xf32> -> vector<32x32xf32>
    %199 = arith.addf %185, %198 : vector<32x32xf32>
    %200 = vector.extract_strided_slice %153 {offsets = [2, 0], sizes = [30, 32], strides = [1, 1]} : vector<32x32xf32> to vector<30x32xf32>
    %201 = vector.extract_strided_slice %153 {offsets = [0, 0], sizes = [2, 32], strides = [1, 1]} : vector<32x32xf32> to vector<2x32xf32>
    %202 = tpu.concatenate %200, %201 in 0 : vector<30x32xf32>, vector<2x32xf32> -> vector<32x32xf32>
    %c14_i32_82 = arith.constant 14 : i32
    %203 = vector.broadcast %c14_i32_82 : i32 to vector<32x1xi32>
    %204 = arith.cmpi slt, %25, %203 : vector<32x1xi32>
    %cst_83 = arith.constant 0.000000e+00 : f32
    %205 = vector.shape_cast %204 : vector<32x1xi1> to vector<32x1xi1>
    %206 = vector.broadcast %205 : vector<32x1xi1> to vector<32x32xi1>
    %207 = vector.broadcast %cst_83 : f32 to vector<32x32xf32>
    %208 = arith.select %206, %202, %207 : vector<32x32xi1>, vector<32x32xf32>
    %209 = arith.truncf %208 : vector<32x32xf32> to vector<32x32xbf16>
    %c4_84 = arith.constant 4 : index
    %c0_85 = arith.constant 0 : index
    %c0_86 = arith.constant 0 : index
    %210 = vector.load %arg8[%c4_84, %c0_85, %c0_86] : memref<5x32x32xbf16, #tpu.memory_space<vmem>>, vector<1x32x32xbf16>
    %211 = vector.shape_cast %210 : vector<1x32x32xbf16> to vector<32x32xbf16>
    %cst_87 = arith.constant dense<0.000000e+00> : vector<32x32xf32>
    %212 = tpu.matmul %209, %211, %cst_87 {dimension_numbers = #tpu.dot_dimension_numbers<[1], [0], [0], [1], [0, 0, 1, 1], [], []>} : vector<32x32xbf16>, vector<32x32xbf16>, vector<32x32xf32> -> vector<32x32xf32>
    %213 = arith.addf %199, %212 : vector<32x32xf32>
    %214 = arith.addf %213, %92 : vector<32x32xf32>
    %215 = math.tanh %214 : vector<32x32xf32>
    %216 = arith.truncf %215 : vector<32x32xf32> to vector<32x32xbf16>
    %c0_88 = arith.constant 0 : index
    %c0_89 = arith.constant 0 : index
    %217 = vector.load %arg9[%c0_88, %c0_89] : memref<32x16xbf16, #tpu.memory_space<vmem>>, vector<32x16xbf16>
    %cst_90 = arith.constant dense<0.000000e+00> : vector<32x16xf32>
    %218 = tpu.matmul %216, %217, %cst_90 {dimension_numbers = #tpu.dot_dimension_numbers<[1], [0], [0], [1], [0, 0, 1, 1], [], []>} : vector<32x32xbf16>, vector<32x16xbf16>, vector<32x16xf32> -> vector<32x16xf32>
    %219 = vector.shape_cast %218 : vector<32x16xf32> to vector<2x16x16xf32>
    %220 = vector.extract_strided_slice %219 {offsets = [0, 0, 0], sizes = [2, 16, 8], strides = [1, 1, 1]} : vector<2x16x16xf32> to vector<2x16x8xf32>
    %221 = vector.extract_strided_slice %219 {offsets = [0, 0, 8], sizes = [2, 16, 8], strides = [1, 1, 1]} : vector<2x16x16xf32> to vector<2x16x8xf32>
    %cst_91 = arith.constant dense<0xFF800000> : vector<2x8xf32>
    %222 = vector.multi_reduction <maximumf>, %220, %cst_91 [1] : vector<2x16x8xf32> to vector<2x8xf32>
    %223 = vector.shape_cast %222 : vector<2x8xf32> to vector<2x1x8xf32>
    %224 = vector.broadcast %223 : vector<2x1x8xf32> to vector<2x16x8xf32>
    %225 = arith.subf %220, %224 : vector<2x16x8xf32>
    %226 = math.exp %225 : vector<2x16x8xf32>
    %227 = arith.mulf %226, %221 : vector<2x16x8xf32>
    %cst_92 = arith.constant dense<0.000000e+00> : vector<2x8xf32>
    %228 = vector.multi_reduction <add>, %227, %cst_92 [1] : vector<2x16x8xf32> to vector<2x8xf32>
    %cst_93 = arith.constant dense<0.000000e+00> : vector<2x8xf32>
    %229 = vector.multi_reduction <add>, %226, %cst_93 [1] : vector<2x16x8xf32> to vector<2x8xf32>
    %230 = arith.divf %228, %229 : vector<2x8xf32>
    %c0_94 = arith.constant 0 : index
    %c0_95 = arith.constant 0 : index
    %231 = vector.load %arg10[%c0_94, %c0_95] : memref<1x8xf32, #tpu.memory_space<vmem>>, vector<1x8xf32>
    %232 = vector.broadcast %231 : vector<1x8xf32> to vector<2x8xf32>
    %233 = arith.addf %230, %232 : vector<2x8xf32>
    %c0_96 = arith.constant 0 : index
    %c0_97 = arith.constant 0 : index
    %234 = vector.load %arg11[%c0_96, %c0_97] : memref<2x8xf32, #tpu.memory_space<vmem>>, vector<2x8xf32>
    tpu.vector_store %arg11[%c0_96, %c0_97], %233 {strides = array<i32>} : memref<2x8xf32, #tpu.memory_space<vmem>>, vector<2x8xf32>,
    %c0_98 = arith.constant 0 : index
    %c0_99 = arith.constant 0 : index
    %235 = vector.load %arg2[%c0_98, %c0_99] : memref<2x8xf32, #tpu.memory_space<vmem>>, vector<2x8xf32>
    %cst_100 = arith.constant 0.000000e+00 : f32
    %236 = vector.broadcast %cst_100 : f32 to vector<2x8xf32>
    %237 = arith.maximumf %233, %236 : vector<2x8xf32>
    %238 = arith.mulf %233, %235 : vector<2x8xf32>
    %239 = arith.subf %237, %238 : vector<2x8xf32>
    %240 = math.absf %233 : vector<2x8xf32>
    %cst_101 = arith.constant 0.000000e+00 : f32
    %241 = vector.broadcast %cst_101 : f32 to vector<2x8xf32>
    %242 = arith.subf %241, %240 : vector<2x8xf32>
    %243 = math.exp %242 : vector<2x8xf32>
    %cst_102 = arith.constant 1.000000e+00 : f32
    %244 = vector.broadcast %cst_102 : f32 to vector<2x8xf32>
    %245 = arith.addf %244, %243 : vector<2x8xf32>
    %246 = math.log %245 : vector<2x8xf32>
    %247 = arith.addf %239, %246 : vector<2x8xf32>
    %248 = vector.shape_cast %247 : vector<2x8xf32> to vector<1x2x8xf32>
    %cst_103 = arith.constant dense<0.000000e+00> : vector<1xf32>
    %249 = vector.multi_reduction <add>, %248, %cst_103 [1, 2] : vector<1x2x8xf32> to vector<1xf32>
    %250 = vector.shape_cast %249 : vector<1xf32> to vector<1x1x1xf32>
    %251 = vector.extract %250[0, 0, 0] : f32 from vector<1x1x1xf32>
    %cst_104 = arith.constant 1.600000e+01 : f32
    %252 = arith.divf %251, %cst_104 : f32
    %253 = vector.broadcast %252 : f32 to vector<1x1xf32>
    %c0_105 = arith.constant 0 : index
    %c0_106 = arith.constant 0 : index
    %254 = vector.load %arg12[%c0_105, %c0_106] : memref<1x1xf32, #tpu.memory_space<vmem>>, vector<1x1xf32>
    tpu.vector_store %arg12[%c0_105, %c0_106], %253 {strides = array<i32>} : memref<1x1xf32, #tpu.memory_space<vmem>>, vector<1x1xf32>,
    return
  }
  func.func @transform_0(%arg0: i32) -> (i32, i32) {
    %c0_i32 = arith.constant 0 : i32
    %c0_i32_0 = arith.constant 0 : i32
    %c0_i32_1 = arith.constant 0 : i32
    return %c0_i32, %c0_i32_0 : i32, i32
  }
  func.func @transform_1(%arg0: i32) -> (i32, i32) {
    %c0_i32 = arith.constant 0 : i32
    %c0_i32_0 = arith.constant 0 : i32
    %c0_i32_1 = arith.constant 0 : i32
    return %c0_i32, %c0_i32_0 : i32, i32
  }
  func.func @transform_2(%arg0: i32) -> (i32, i32) {
    %c0_i32 = arith.constant 0 : i32
    %c0_i32_0 = arith.constant 0 : i32
    %c0_i32_1 = arith.constant 0 : i32
    return %c0_i32, %c0_i32_0 : i32, i32
  }
  func.func @transform_3(%arg0: i32) -> (i32, i32, i32) {
    %c0_i32 = arith.constant 0 : i32
    %c0_i32_0 = arith.constant 0 : i32
    %c0_i32_1 = arith.constant 0 : i32
    %c0_i32_2 = arith.constant 0 : i32
    return %c0_i32, %c0_i32_0, %c0_i32_1 : i32, i32, i32
  }
  func.func @transform_4(%arg0: i32) -> (i32, i32) {
    %c0_i32 = arith.constant 0 : i32
    %c0_i32_0 = arith.constant 0 : i32
    %c0_i32_1 = arith.constant 0 : i32
    return %c0_i32, %c0_i32_0 : i32, i32
  }
  func.func @transform_5(%arg0: i32) -> (i32, i32) {
    %c0_i32 = arith.constant 0 : i32
    %c0_i32_0 = arith.constant 0 : i32
    %c0_i32_1 = arith.constant 0 : i32
    return %c0_i32, %c0_i32_0 : i32, i32
  }
  func.func @transform_6(%arg0: i32) -> (i32, i32, i32) {
    %c0_i32 = arith.constant 0 : i32
    %c0_i32_0 = arith.constant 0 : i32
    %c0_i32_1 = arith.constant 0 : i32
    %c0_i32_2 = arith.constant 0 : i32
    return %c0_i32, %c0_i32_0, %c0_i32_1 : i32, i32, i32
  }
  func.func @transform_7(%arg0: i32) -> (i32, i32, i32) {
    %c0_i32 = arith.constant 0 : i32
    %c0_i32_0 = arith.constant 0 : i32
    %c0_i32_1 = arith.constant 0 : i32
    %c0_i32_2 = arith.constant 0 : i32
    return %c0_i32, %c0_i32_0, %c0_i32_1 : i32, i32, i32
  }
  func.func @transform_8(%arg0: i32) -> (i32, i32) {
    %c0_i32 = arith.constant 0 : i32
    %c0_i32_0 = arith.constant 0 : i32
    %c0_i32_1 = arith.constant 0 : i32
    return %c0_i32, %c0_i32_0 : i32, i32
  }
  func.func @transform_9(%arg0: i32) -> (i32, i32) {
    %c0_i32 = arith.constant 0 : i32
    %c0_i32_0 = arith.constant 0 : i32
    %c0_i32_1 = arith.constant 0 : i32
    return %c0_i32, %c0_i32_0 : i32, i32
  }
  func.func @transform_10(%arg0: i32) -> (i32, i32) {
    %c0_i32 = arith.constant 0 : i32
    %c0_i32_0 = arith.constant 0 : i32
    %c0_i32_1 = arith.constant 0 : i32
    return %c0_i32, %c0_i32_0 : i32, i32
  }
  func.func @transform_11(%arg0: i32) -> (i32, i32) {
    %c0_i32 = arith.constant 0 : i32
    %c0_i32_0 = arith.constant 0 : i32
    %c0_i32_1 = arith.constant 0 : i32
    return %c0_i32, %c0_i32_0 : i32, i32
  }
}

</mosaic_0001>

<llo_original>
// kernel: multirescnn_forward.1
$region0: #{multirescnn_forward.1}
  #allocation0 [shape = 'u32[]', space=smem, size = 0x4, offset = 0x4, fixed_abs, tag = 'smem constant byte address 0x4 - core index']
  #allocation1 [shape = 'u32[144,128]{1,0:T(1,128)}', space=vmem, size = 0x12000, scoped, tag = 'internal scratch']
  %s0 = inlined_call_operand.vmem [shape: s32[32,1], index: 0, kind: input, shape index: {}]
  %s1 = inlined_call_operand.vmem [shape: f32[2,8], index: 1, kind: input, shape index: {}]
  %s2 = inlined_call_operand.vmem [shape: bf16[52,32], index: 2, kind: input, shape index: {}]
  %s3 = inlined_call_operand.vmem [shape: bf16[5,32,64], index: 3, kind: input, shape index: {}]
  %s4 = inlined_call_operand.vmem [shape: f32[1,64], index: 4, kind: input, shape index: {}]
  %s5 = inlined_call_operand.vmem [shape: bf16[64,32], index: 5, kind: input, shape index: {}]
  %s6 = inlined_call_operand.vmem [shape: bf16[5,64,32], index: 6, kind: input, shape index: {}]
  %s7 = inlined_call_operand.vmem [shape: bf16[5,32,32], index: 7, kind: input, shape index: {}]
  %s8 = inlined_call_operand.vmem [shape: bf16[32,16], index: 8, kind: input, shape index: {}]
  %s9 = inlined_call_operand.vmem [shape: f32[1,8], index: 9, kind: input, shape index: {}]
  %s10 = inlined_call_operand.hbm [shape: f32[2,8], index: 10, kind: output, shape index: {0}]
  %s11 = inlined_call_operand.hbm [shape: f32[1,1], index: 11, kind: output, shape index: {1}]
  %12 = xla_tuple %s10, %s11
  %s13 = sld [smem:[#allocation0]]
  $region58: #{multirescnn_forward.1} parent=0
    _
  %s15 = ssub.s32 1, %s13
  %s16 = scalar_select 0, %s15, %s13
  $region1: #{multirescnn_forward.1} parent=0
    #allocation2 [shape = 'u8[1024]{0}', space=vmem, size = 0x400, scoped, tag = 'output window, operand 0, single buffered']
    #allocation3 [shape = 's32[1]{0}', space=sflag, size = 0x4, scoped, tag = 'scoped memory for multirescnn_forward.1']
    #allocation4 [shape = 'u8[512]{0}', space=vmem, size = 0x400, scoped, tag = 'output window, operand 1, single buffered']
    #allocation5 [shape = 's32[1]{0}', space=sflag, size = 0x4, scoped, tag = 'scoped memory for multirescnn_forward.1']
    %17 = vsyncpa [#allocation3], 0
    %18 = vsyncpa [#allocation5], 0
    // Predicated region
    $region2: #{multirescnn_forward.1} parent=1 // pred_check
      _
    $region3: #{multirescnn_forward.1} parent=1 // pred_check_branch
      %20 = sbr.rel (0) target = $region5
    $region4: #{multirescnn_forward.1} parent=1 // pred_region
      _
    $region5: #{multirescnn_forward.1} parent=1 // pred_fallthru
      _
    // Predicated region
    $region6: #{multirescnn_forward.1} parent=1 // pred_check
      _
    $region7: #{multirescnn_forward.1} parent=1 // pred_check_branch
      %22 = sbr.rel (0) target = $region9
    $region8: #{multirescnn_forward.1} parent=1 // pred_region
      _
    $region9: #{multirescnn_forward.1} parent=1 // pred_fallthru
      _
    // Predicated region
    $region10: #{multirescnn_forward.1} parent=1 // pred_check
      _
    $region11: #{multirescnn_forward.1} parent=1 // pred_check_branch
      %24 = sbr.rel (0) target = $region13
    $region12: #{multirescnn_forward.1} parent=1 // pred_region
      _
    $region13: #{multirescnn_forward.1} parent=1 // pred_fallthru
      _
    // Predicated region
    $region14: #{multirescnn_forward.1} parent=1 // pred_check
      _
    $region15: #{multirescnn_forward.1} parent=1 // pred_check_branch
      %26 = sbr.rel (0) target = $region17
    $region16: #{multirescnn_forward.1} parent=1 // pred_region
      _
    $region17: #{multirescnn_forward.1} parent=1 // pred_fallthru
      _
    // Predicated region
    $region18: #{multirescnn_forward.1} parent=1 // pred_check
      _
    $region19: #{multirescnn_forward.1} parent=1 // pred_check_branch
      %28 = sbr.rel (0) target = $region21
    $region20: #{multirescnn_forward.1} parent=1 // pred_region
      _
    $region21: #{multirescnn_forward.1} parent=1 // pred_fallthru
      _
    // Predicated region
    $region22: #{multirescnn_forward.1} parent=1 // pred_check
      _
    $region23: #{multirescnn_forward.1} parent=1 // pred_check_branch
      %30 = sbr.rel (0) target = $region25
    $region24: #{multirescnn_forward.1} parent=1 // pred_region
      _
    $region25: #{multirescnn_forward.1} parent=1 // pred_fallthru
      _
    // Predicated region
    $region26: #{multirescnn_forward.1} parent=1 // pred_check
      _
    $region27: #{multirescnn_forward.1} parent=1 // pred_check_branch
      %32 = sbr.rel (0) target = $region29
    $region28: #{multirescnn_forward.1} parent=1 // pred_region
      _
    $region29: #{multirescnn_forward.1} parent=1 // pred_fallthru
      _
    // Predicated region
    $region30: #{multirescnn_forward.1} parent=1 // pred_check
      _
    $region31: #{multirescnn_forward.1} parent=1 // pred_check_branch
      %34 = sbr.rel (0) target = $region33
    $region32: #{multirescnn_forward.1} parent=1 // pred_region
      _
    $region33: #{multirescnn_forward.1} parent=1 // pred_fallthru
      _
    // Predicated region
    $region34: #{multirescnn_forward.1} parent=1 // pred_check
      _
    $region35: #{multirescnn_forward.1} parent=1 // pred_check_branch
      %36 = sbr.rel (0) target = $region37
    $region36: #{multirescnn_forward.1} parent=1 // pred_region
      _
    $region37: #{multirescnn_forward.1} parent=1 // pred_fallthru
      _
    // Predicated region
    $region38: #{multirescnn_forward.1} parent=1 // pred_check
      _
    $region39: #{multirescnn_forward.1} parent=1 // pred_check_branch
      %38 = sbr.rel (0) target = $region41
    $region40: #{multirescnn_forward.1} parent=1 // pred_region
      _
    $region41: #{multirescnn_forward.1} parent=1 // pred_fallthru
      _
    %v40 = vld [vmem:[%s0] sm:$0xff]
    %v41 = vld [vmem:[%s0 + $0x8] sm:$0xff]
    %v42 = vld [vmem:[%s0 + $0x10] sm:$0xff]
    %v43 = vld [vmem:[%s0 + $0x18] sm:$0xff]
    %v44 = vlaneseq
    %v45 = vand.u32 %v44, 127
    %46 = vset.pattern.permute.xlu0 0
    %47 = vperm.xlu0 %46, %v40
    %v48 = vpop.permute.xlu0 %47
    %49 = vset.pattern.permute.xlu0 0
    %50 = vperm.xlu0 %49, %v41
    %v51 = vpop.permute.xlu0 %50
    %52 = vset.pattern.permute.xlu0 0
    %53 = vperm.xlu0 %52, %v42
    %v54 = vpop.permute.xlu0 %53
    %55 = vset.pattern.permute.xlu0 0
    %56 = vperm.xlu0 %55, %v43
    %v57 = vpop.permute.xlu0 %56
    %vm58 = vcmp.eq.s32.totalorder %v45, %v48
    %vm59 = vcmp.eq.s32.totalorder %v45, %v51
    %vm60 = vcmp.eq.s32.totalorder %v45, %v54
    %vm61 = vcmp.eq.s32.totalorder %v45, %v57
    %v62 = vsel %vm58, 1, 0
    %v63 = vsel %vm59, 1, 0
    %v64 = vsel %vm60, 1, 0
    %v65 = vsel %vm61, 1, 0
    %v66 = vcvt.s32.f32 %v62
    %v67 = vcvt.s32.f32 %v63
    %v68 = vcvt.s32.f32 %v64
    %v69 = vcvt.s32.f32 %v65
    %v70 = vpack.c.bf16 %v67, %v66
    %v71 = vpack.c.bf16 %v69, %v68
    %v72 = vld [vmem:[%s2] sm:$0xf]
    %v73 = vld [vmem:[%s2 + $0x4] sm:$0xf]
    %v74 = vld [vmem:[%s2 + $0x8] sm:$0xf]
    %v75 = vld [vmem:[%s2 + $0xc] sm:$0xf]
    %v76 = vld [vmem:[%s2 + $0x10] sm:$0xf]
    %v77 = vld [vmem:[%s2 + $0x14] sm:$0xf]
    %v78 = vld [vmem:[%s2 + $0x18] sm:$0x3]
    %v86 = vunpack.c.l.b16 %v72
    %v87 = vunpack.c.l.b16 %v73
    %v88 = vunpack.c.l.b16 %v74
    %v89 = vunpack.c.l.b16 %v75
    %v90 = vunpack.c.l.b16 %v76
    %v91 = vunpack.c.l.b16 %v77
    %v92 = vunpack.c.l.b16 %v78
    %v93 = vpack.c.b16 %v87, %v86
    %v94 = vpack.c.b16 %v89, %v88
    %v95 = vpack.c.b16 %v91, %v90
    %v96 = vpack.c.b16 %v92, %v92
    %vm100 = vcmask 424960
    %v102 = vsel %vm100, %v70, 0
    %v105 = vsel %vm100, %v71, 0
    %vm107 = vcmask 1041408
    %v109 = vsel %vm107, %v96, 0
    %111 = vmatprep.subr.bf16.mxu0 0
    %112 = vmatpush1.bf16.msra.mxu0 0
    %113 = vmatprep.subr.bf16.mxu0 0
    %114 = vmatpush1.bf16.msra.mxu0 0
    %115 = vmatprep.subr.bf16.mxu0 0
    %116 = vmatpush1.bf16.msra.mxu0 0
    %117 = vmatprep.subr.bf16.mxu0 0
    %118 = vmatpush1.bf16.msra.mxu0 0
    %119 = vmatprep.subr.bf16.mxu0 0
    %120 = vmatpush1.bf16.msra.mxu0 %v109
    %121 = vmatprep.subr.bf16.mxu0 0
    %122 = vmatpush1.bf16.msra.mxu0 %v95
    %123 = vmatprep.subr.bf16.mxu0 0
    %124 = vmatpush1.bf16.msra.mxu0 %v94
    %125 = vmatprep.subr.bf16.mxu0 0
    %126 = vmatpush1.bf16.msra.mxu0 %v93
    %127 = vmatprep.subr.bf16.mxu0 0
    %128 = vmatpush2.bf16.msra.mxu0 0
    %129 = vmatprep.subr.bf16.mxu0 0
    %130 = vmatpush2.bf16.msra.mxu0 0
    %131 = vmatprep.subr.bf16.mxu0 0
    %132 = vmatpush2.bf16.msra.mxu0 0
    %133 = vmatprep.subr.bf16.mxu0 0
    %134 = vmatpush2.bf16.msra.mxu0 0
    %135 = vmatprep.subr.bf16.mxu0 0
    %136 = vmatpush2.bf16.msra.mxu0 0
    %137 = vmatprep.subr.bf16.mxu0 0
    %138 = vmatpush2.bf16.msra.mxu0 0
    %139 = vmatprep.subr.bf16.mxu0 0
    %140 = vmatpush2.bf16.msra.mxu0 0
    %141 = vmatprep.subr.bf16.mxu0 0
    %142 = vmatpush2.bf16.msra.mxu0 0
    %143 = vmatprep.mubr.bf16.mxu0 0
    %144 = vmatmul.mubr.bf16.gmra.mxu0 %v102
    %v145 = vpop.f32.mrf.mxu0
    %v146 = vadd.f32 0.0, %v145
    %v147 = vpop.f32.mrf.mxu0
    %v148 = vpop.f32.mrf.mxu0
    %v149 = vadd.f32 0.0, %v148
    %v150 = vpop.f32.mrf.mxu0
    %151 = vmatprep.mubr.bf16.mxu0 0
    %152 = vmatmul.mubr.bf16.gmra.mxu0 %v105
    %v153 = vpop.f32.mrf.mxu0
    %v154 = vadd.f32 0.0, %v153
    %v155 = vpop.f32.mrf.mxu0
    %v156 = vpop.f32.mrf.mxu0
    %v157 = vadd.f32 0.0, %v156
    %v158 = vpop.f32.mrf.mxu0
    %159 = vdwg.mxu0
    %v160 = vlaneseq
    %v161 = vshrl.u32 %v160, 7
    %v162 = vadd.s32 %v161, 8
    %v163 = vadd.s32 %v161, 16
    %v164 = vadd.s32 %v161, 24
    %vm165 = vcmp.lt.s32.totalorder %v161, 0
    %v166 = vsub.s32 0, %v161
    %v167 = vsel %vm165, %v166, %v161
    %v168 = vshrl.u32 %v167, 4
    %v169 = vand.u32 %v167, 15
    %v170 = vsub.s32 0, %v169
    %v171 = vsel %vm165, %v170, %v169
    %vm172 = vcmp.lt.s32.totalorder %v162, 0
    %v173 = vsub.s32 0, %v162
    %v174 = vsel %vm172, %v173, %v162
    %v175 = vshrl.u32 %v174, 4
    %v176 = vand.u32 %v174, 15
    %v177 = vsub.s32 0, %v176
    %v178 = vsel %vm172, %v177, %v176
    %vm179 = vcmp.lt.s32.totalorder %v163, 0
    %v180 = vsub.s32 0, %v163
    %v181 = vsel %vm179, %v180, %v163
    %v182 = vshrl.u32 %v181, 4
    %v183 = vand.u32 %v181, 15
    %v184 = vsub.s32 0, %v183
    %v185 = vsel %vm179, %v184, %v183
    %vm186 = vcmp.lt.s32.totalorder %v164, 0
    %v187 = vsub.s32 0, %v164
    %v188 = vsel %vm186, %v187, %v164
    %v189 = vshrl.u32 %v188, 4
    %v190 = vand.u32 %v188, 15
    %v191 = vsub.s32 0, %v190
    %v192 = vsel %vm186, %v191, %v190
    %vm193 = vcmp.ne.s32.totalorder %v171, 0
    %vm194 = vcmp.ne.s32.totalorder %v178, 0
    %vm195 = vcmp.ne.s32.totalorder %v185, 0
    %vm196 = vcmp.ne.s32.totalorder %v192, 0
    %vm197 = vcmp.lt.s32.totalorder %v171, 0
    %vm198 = vcmp.lt.s32.totalorder %v178, 0
    %vm199 = vcmp.lt.s32.totalorder %v185, 0
    %vm200 = vcmp.lt.s32.totalorder %v192, 0
    %vm201 = vmand %vm197, %vm193
    %vm202 = vmand %vm198, %vm194
    %vm203 = vmand %vm199, %vm195
    %vm204 = vmand %vm200, %vm196
    %v205 = vadd.s32 %v171, 16
    %v206 = vadd.s32 %v178, 16
    %v207 = vadd.s32 %v185, 16
    %v208 = vadd.s32 %v192, 16
    %v209 = vsel %vm201, %v205, %v171
    %v210 = vsel %vm202, %v206, %v178
    %v211 = vsel %vm203, %v207, %v185
    %v212 = vsel %vm204, %v208, %v192
    %v214 = vrot.slane %v157, 6
    %v219 = vrot.slane %v146, 6
    %v220 = vrot.slane %v149, 6
    %v221 = vsel %vm107, %v219, %v220
    %v222 = vrot.slane %v154, 6
    %v223 = vsel %vm107, %v220, %v222
    %v224 = vsel %vm107, %v222, %v214
    %v229 = vsel %vm107, %v214, %v219
    %vm230 = vcmp.ge.s32.totalorder %v209, 2
    %vm231 = vcmp.ge.s32.totalorder %v210, 2
    %vm232 = vcmp.ge.s32.totalorder %v211, 2
    %vm233 = vcmp.ge.s32.totalorder %v212, 2
    %v234 = vsel %vm230, 1, 0
    %v235 = vsel %vm231, 1, 0
    %v236 = vsel %vm232, 1, 0
    %v237 = vsel %vm233, 1, 0
    %vm238 = vcmp.eq.s32.totalorder %v234, 1
    %vm239 = vcmp.eq.s32.totalorder %v235, 1
    %vm240 = vcmp.eq.s32.totalorder %v236, 1
    %vm241 = vcmp.eq.s32.totalorder %v237, 1
    %v242 = vsel %vm238, %v229, 0.0
    %v243 = vsel %vm239, %v221, 0.0
    %v244 = vsel %vm240, %v223, 0.0
    %v245 = vsel %vm241, %v224, 0.0
    %v246 = vpack.c.bf16 %v243, %v242
    %v247 = vpack.c.bf16 %v245, %v244
    %v248 = vld [vmem:[%s3] sm:$0xf]
    %v249 = vld [vmem:[%s3 + $0x4] sm:$0xf]
    %v250 = vld [vmem:[%s3 + $0x8] sm:$0xf]
    %v251 = vld [vmem:[%s3 + $0xc] sm:$0xf]
    %v252 = vrot.slane %v157, 7
    %vm254 = vcmask 1040384
    %v255 = vrot.slane %v146, 7
    %v256 = vrot.slane %v149, 7
    %v257 = vsel %vm254, %v255, %v256
    %v258 = vrot.slane %v154, 7
    %v259 = vsel %vm254, %v256, %v258
    %v260 = vsel %vm254, %v258, %v252
    %v265 = vsel %vm254, %v252, %v255
    %vm266 = vcmp.ge.s32.totalorder %v209, 1
    %vm267 = vcmp.ge.s32.totalorder %v210, 1
    %vm268 = vcmp.ge.s32.totalorder %v211, 1
    %vm269 = vcmp.ge.s32.totalorder %v212, 1
    %v270 = vsel %vm266, 1, 0
    %v271 = vsel %vm267, 1, 0
    %v272 = vsel %vm268, 1, 0
    %v273 = vsel %vm269, 1, 0
    %vm274 = vcmp.eq.s32.totalorder %v270, 1
    %vm275 = vcmp.eq.s32.totalorder %v271, 1
    %vm276 = vcmp.eq.s32.totalorder %v272, 1
    %vm277 = vcmp.eq.s32.totalorder %v273, 1
    %v278 = vsel %vm274, %v265, 0.0
    %v279 = vsel %vm275, %v257, 0.0
    %v280 = vsel %vm276, %v259, 0.0
    %v281 = vsel %vm277, %v260, 0.0
    %v282 = vpack.c.bf16 %v279, %v278
    %v283 = vpack.c.bf16 %v281, %v280
    %s284 = scalar_lea.vmem %s3, 16
    %v285 = vld [vmem:[%s284] sm:$0xf]
    %v286 = vld [vmem:[%s284 + $0x4] sm:$0xf]
    %v287 = vld [vmem:[%s284 + $0x8] sm:$0xf]
    %v288 = vld [vmem:[%s284 + $0xc] sm:$0xf]
    %v293 = vunpack.c.l.b16 %v285
    %v294 = vunpack.c.l.b16 %v286
    %v295 = vunpack.c.l.b16 %v287
    %v296 = vunpack.c.l.b16 %v288
    %v297 = vpack.c.b16 %v294, %v293
    %v298 = vpack.c.b16 %v296, %v295
    %vm301 = vcmask 261120
    %v303 = vsel %vm301, %v282, 0
    %v306 = vsel %vm301, %v283, 0
    %308 = vmatprep.subr.bf16.mxu0 0
    %309 = vmatpush1.bf16.msra.mxu0 0
    %310 = vmatprep.subr.bf16.mxu0 0
    %311 = vmatpush1.bf16.msra.mxu0 0
    %312 = vmatprep.subr.bf16.mxu0 0
    %313 = vmatpush1.bf16.msra.mxu0 0
    %314 = vmatprep.subr.bf16.mxu0 0
    %315 = vmatpush1.bf16.msra.mxu0 0
    %316 = vmatprep.subr.bf16.mxu0 0
    %317 = vmatpush1.bf16.msra.mxu0 0
    %318 = vmatprep.subr.bf16.mxu0 0
    %319 = vmatpush1.bf16.msra.mxu0 0
    %320 = vmatprep.subr.bf16.mxu0 0
    %321 = vmatpush1.bf16.msra.mxu0 %v298
    %322 = vmatprep.subr.bf16.mxu0 0
    %323 = vmatpush1.bf16.msra.mxu0 %v297
    %324 = vmatprep.subr.bf16.mxu0 0
    %325 = vmatpush2.bf16.msra.mxu0 0
    %326 = vmatprep.subr.bf16.mxu0 0
    %327 = vmatpush2.bf16.msra.mxu0 0
    %328 = vmatprep.subr.bf16.mxu0 0
    %329 = vmatpush2.bf16.msra.mxu0 0
    %330 = vmatprep.subr.bf16.mxu0 0
    %331 = vmatpush2.bf16.msra.mxu0 0
    %332 = vmatprep.subr.bf16.mxu0 0
    %333 = vmatpush2.bf16.msra.mxu0 0
    %334 = vmatprep.subr.bf16.mxu0 0
    %335 = vmatpush2.bf16.msra.mxu0 0
    %336 = vmatprep.subr.bf16.mxu0 0
    %337 = vmatpush2.bf16.msra.mxu0 0
    %338 = vmatprep.subr.bf16.mxu0 0
    %339 = vmatpush2.bf16.msra.mxu0 0
    %340 = vmatprep.mubr.bf16.mxu0 0
    %341 = vmatmul.mubr.bf16.gmra.mxu0 %v303
    %v342 = vpop.f32.mrf.mxu0
    %v343 = vadd.f32 0.0, %v342
    %v344 = vpop.f32.mrf.mxu0
    %v345 = vpop.f32.mrf.mxu0
    %v346 = vadd.f32 0.0, %v345
    %v347 = vpop.f32.mrf.mxu0
    %348 = vmatprep.mubr.bf16.mxu0 0
    %349 = vmatmul.mubr.bf16.gmra.mxu0 %v306
    %v350 = vpop.f32.mrf.mxu0
    %v351 = vadd.f32 0.0, %v350
    %v352 = vpop.f32.mrf.mxu0
    %v353 = vpop.f32.mrf.mxu0
    %v354 = vadd.f32 0.0, %v353
    %v355 = vpop.f32.mrf.mxu0
    %356 = vdwg.mxu0
    %v361 = vunpack.c.l.b16 %v248
    %v362 = vunpack.c.l.b16 %v249
    %v363 = vunpack.c.l.b16 %v250
    %v364 = vunpack.c.l.b16 %v251
    %v365 = vpack.c.b16 %v362, %v361
    %v366 = vpack.c.b16 %v364, %v363
    %v370 = vsel %vm301, %v246, 0
    %v373 = vsel %vm301, %v247, 0
    %375 = vmatprep.subr.bf16.mxu0 0
    %376 = vmatpush1.bf16.msra.mxu0 0
    %377 = vmatprep.subr.bf16.mxu0 0
    %378 = vmatpush1.bf16.msra.mxu0 0
    %379 = vmatprep.subr.bf16.mxu0 0
    %380 = vmatpush1.bf16.msra.mxu0 0
    %381 = vmatprep.subr.bf16.mxu0 0
    %382 = vmatpush1.bf16.msra.mxu0 0
    %383 = vmatprep.subr.bf16.mxu0 0
    %384 = vmatpush1.bf16.msra.mxu0 0
    %385 = vmatprep.subr.bf16.mxu0 0
    %386 = vmatpush1.bf16.msra.mxu0 0
    %387 = vmatprep.subr.bf16.mxu0 0
    %388 = vmatpush1.bf16.msra.mxu0 %v366
    %389 = vmatprep.subr.bf16.mxu0 0
    %390 = vmatpush1.bf16.msra.mxu0 %v365
    %391 = vmatprep.subr.bf16.mxu0 0
    %392 = vmatpush2.bf16.msra.mxu0 0
    %393 = vmatprep.subr.bf16.mxu0 0
    %394 = vmatpush2.bf16.msra.mxu0 0
    %395 = vmatprep.subr.bf16.mxu0 0
    %396 = vmatpush2.bf16.msra.mxu0 0
    %397 = vmatprep.subr.bf16.mxu0 0
    %398 = vmatpush2.bf16.msra.mxu0 0
    %399 = vmatprep.subr.bf16.mxu0 0
    %400 = vmatpush2.bf16.msra.mxu0 0
    %401 = vmatprep.subr.bf16.mxu0 0
    %402 = vmatpush2.bf16.msra.mxu0 0
    %403 = vmatprep.subr.bf16.mxu0 0
    %404 = vmatpush2.bf16.msra.mxu0 0
    %405 = vmatprep.subr.bf16.mxu0 0
    %406 = vmatpush2.bf16.msra.mxu0 0
    %407 = vmatprep.mubr.bf16.mxu0 0
    %408 = vmatmul.mubr.bf16.gmra.mxu0 %v370
    %v409 = vpop.f32.mrf.mxu0
    %v410 = vadd.f32 %v343, %v409
    %v411 = vpop.f32.mrf.mxu0
    %v412 = vpop.f32.mrf.mxu0
    %v413 = vadd.f32 %v346, %v412
    %v414 = vpop.f32.mrf.mxu0
    %415 = vmatprep.mubr.bf16.mxu0 0
    %416 = vmatmul.mubr.bf16.gmra.mxu0 %v373
    %v417 = vpop.f32.mrf.mxu0
    %v418 = vadd.f32 %v351, %v417
    %v419 = vpop.f32.mrf.mxu0
    %v420 = vpop.f32.mrf.mxu0
    %v421 = vadd.f32 %v354, %v420
    %v422 = vpop.f32.mrf.mxu0
    %423 = vdwg.mxu0
    %v424 = vpack.c.bf16 %v149, %v146
    %v425 = vpack.c.bf16 %v157, %v154
    %s426 = scalar_lea.vmem %s3, 32
    %v427 = vld [vmem:[%s426] sm:$0xf]
    %v428 = vld [vmem:[%s426 + $0x4] sm:$0xf]
    %v429 = vld [vmem:[%s426 + $0x8] sm:$0xf]
    %v430 = vld [vmem:[%s426 + $0xc] sm:$0xf]
    %v435 = vunpack.c.l.b16 %v427
    %v436 = vunpack.c.l.b16 %v428
    %v437 = vunpack.c.l.b16 %v429
    %v438 = vunpack.c.l.b16 %v430
    %v439 = vpack.c.b16 %v436, %v435
    %v440 = vpack.c.b16 %v438, %v437
    %v444 = vsel %vm301, %v424, 0
    %v447 = vsel %vm301, %v425, 0
    %449 = vmatprep.subr.bf16.mxu0 0
    %450 = vmatpush1.bf16.msra.mxu0 0
    %451 = vmatprep.subr.bf16.mxu0 0
    %452 = vmatpush1.bf16.msra.mxu0 0
    %453 = vmatprep.subr.bf16.mxu0 0
    %454 = vmatpush1.bf16.msra.mxu0 0
    %455 = vmatprep.subr.bf16.mxu0 0
    %456 = vmatpush1.bf16.msra.mxu0 0
    %457 = vmatprep.subr.bf16.mxu0 0
    %458 = vmatpush1.bf16.msra.mxu0 0
    %459 = vmatprep.subr.bf16.mxu0 0
    %460 = vmatpush1.bf16.msra.mxu0 0
    %461 = vmatprep.subr.bf16.mxu0 0
    %462 = vmatpush1.bf16.msra.mxu0 %v440
    %463 = vmatprep.subr.bf16.mxu0 0
    %464 = vmatpush1.bf16.msra.mxu0 %v439
    %465 = vmatprep.subr.bf16.mxu0 0
    %466 = vmatpush2.bf16.msra.mxu0 0
    %467 = vmatprep.subr.bf16.mxu0 0
    %468 = vmatpush2.bf16.msra.mxu0 0
    %469 = vmatprep.subr.bf16.mxu0 0
    %470 = vmatpush2.bf16.msra.mxu0 0
    %471 = vmatprep.subr.bf16.mxu0 0
    %472 = vmatpush2.bf16.msra.mxu0 0
    %473 = vmatprep.subr.bf16.mxu0 0
    %474 = vmatpush2.bf16.msra.mxu0 0
    %475 = vmatprep.subr.bf16.mxu0 0
    %476 = vmatpush2.bf16.msra.mxu0 0
    %477 = vmatprep.subr.bf16.mxu0 0
    %478 = vmatpush2.bf16.msra.mxu0 0
    %479 = vmatprep.subr.bf16.mxu0 0
    %480 = vmatpush2.bf16.msra.mxu0 0
    %481 = vmatprep.mubr.bf16.mxu0 0
    %482 = vmatmul.mubr.bf16.gmra.mxu0 %v444
    %v483 = vpop.f32.mrf.mxu0
    %v484 = vadd.f32 0.0, %v483
    %v485 = vpop.f32.mrf.mxu0
    %v486 = vpop.f32.mrf.mxu0
    %v487 = vadd.f32 0.0, %v486
    %v488 = vpop.f32.mrf.mxu0
    %489 = vmatprep.mubr.bf16.mxu0 0
    %490 = vmatmul.mubr.bf16.gmra.mxu0 %v447
    %v491 = vpop.f32.mrf.mxu0
    %v492 = vadd.f32 0.0, %v491
    %v493 = vpop.f32.mrf.mxu0
    %v494 = vpop.f32.mrf.mxu0
    %v495 = vadd.f32 0.0, %v494
    %v496 = vpop.f32.mrf.mxu0
    %497 = vdwg.mxu0
    %v498 = vadd.f32 %v410, %v484
    %v499 = vadd.f32 %v413, %v487
    %v500 = vadd.f32 %v418, %v492
    %v501 = vadd.f32 %v421, %v495
    %vm502 = vcmask 1046528
    %v503 = vrot.slane %v146, 1
    %v504 = vrot.slane %v149, 1
    %v505 = vsel %vm502, %v503, %v504
    %v506 = vrot.slane %v154, 1
    %v507 = vsel %vm502, %v504, %v506
    %v508 = vrot.slane %v157, 1
    %v509 = vsel %vm502, %v506, %v508
    %v515 = vsel %vm502, %v508, %v503
    %vm516 = vcmp.lt.s32.totalorder %v209, 15
    %vm517 = vcmp.lt.s32.totalorder %v210, 15
    %vm518 = vcmp.lt.s32.totalorder %v211, 15
    %vm519 = vcmp.lt.s32.totalorder %v212, 15
    %v520 = vsel %vm516, 1, 0
    %v521 = vsel %vm517, 1, 0
    %v522 = vsel %vm518, 1, 0
    %v523 = vsel %vm519, 1, 0
    %vm524 = vcmp.eq.s32.totalorder %v520, 1
    %vm525 = vcmp.eq.s32.totalorder %v521, 1
    %vm526 = vcmp.eq.s32.totalorder %v522, 1
    %vm527 = vcmp.eq.s32.totalorder %v523, 1
    %v528 = vsel %vm524, %v505, 0.0
    %v529 = vsel %vm525, %v507, 0.0
    %v530 = vsel %vm526, %v509, 0.0
    %v531 = vsel %vm527, %v515, 0.0
    %v532 = vpack.c.bf16 %v529, %v528
    %v533 = vpack.c.bf16 %v531, %v530
    %s534 = scalar_lea.vmem %s3, 48
    %v535 = vld [vmem:[%s534] sm:$0xf]
    %v536 = vld [vmem:[%s534 + $0x4] sm:$0xf]
    %v537 = vld [vmem:[%s534 + $0x8] sm:$0xf]
    %v538 = vld [vmem:[%s534 + $0xc] sm:$0xf]
    %v543 = vunpack.c.l.b16 %v535
    %v544 = vunpack.c.l.b16 %v536
    %v545 = vunpack.c.l.b16 %v537
    %v546 = vunpack.c.l.b16 %v538
    %v547 = vpack.c.b16 %v544, %v543
    %v548 = vpack.c.b16 %v546, %v545
    %v552 = vsel %vm301, %v532, 0
    %v555 = vsel %vm301, %v533, 0
    %557 = vmatprep.subr.bf16.mxu0 0
    %558 = vmatpush1.bf16.msra.mxu0 0
    %559 = vmatprep.subr.bf16.mxu0 0
    %560 = vmatpush1.bf16.msra.mxu0 0
    %561 = vmatprep.subr.bf16.mxu0 0
    %562 = vmatpush1.bf16.msra.mxu0 0
    %563 = vmatprep.subr.bf16.mxu0 0
    %564 = vmatpush1.bf16.msra.mxu0 0
    %565 = vmatprep.subr.bf16.mxu0 0
    %566 = vmatpush1.bf16.msra.mxu0 0
    %567 = vmatprep.subr.bf16.mxu0 0
    %568 = vmatpush1.bf16.msra.mxu0 0
    %569 = vmatprep.subr.bf16.mxu0 0
    %570 = vmatpush1.bf16.msra.mxu0 %v548
    %571 = vmatprep.subr.bf16.mxu0 0
    %572 = vmatpush1.bf16.msra.mxu0 %v547
    %573 = vmatprep.subr.bf16.mxu0 0
    %574 = vmatpush2.bf16.msra.mxu0 0
    %575 = vmatprep.subr.bf16.mxu0 0
    %576 = vmatpush2.bf16.msra.mxu0 0
    %577 = vmatprep.subr.bf16.mxu0 0
    %578 = vmatpush2.bf16.msra.mxu0 0
    %579 = vmatprep.subr.bf16.mxu0 0
    %580 = vmatpush2.bf16.msra.mxu0 0
    %581 = vmatprep.subr.bf16.mxu0 0
    %582 = vmatpush2.bf16.msra.mxu0 0
    %583 = vmatprep.subr.bf16.mxu0 0
    %584 = vmatpush2.bf16.msra.mxu0 0
    %585 = vmatprep.subr.bf16.mxu0 0
    %586 = vmatpush2.bf16.msra.mxu0 0
    %587 = vmatprep.subr.bf16.mxu0 0
    %588 = vmatpush2.bf16.msra.mxu0 0
    %589 = vmatprep.mubr.bf16.mxu0 0
    %590 = vmatmul.mubr.bf16.gmra.mxu0 %v552
    %v591 = vpop.f32.mrf.mxu0
    %v592 = vadd.f32 0.0, %v591
    %v593 = vpop.f32.mrf.mxu0
    %v594 = vpop.f32.mrf.mxu0
    %v595 = vadd.f32 0.0, %v594
    %v596 = vpop.f32.mrf.mxu0
    %597 = vmatprep.mubr.bf16.mxu0 0
    %598 = vmatmul.mubr.bf16.gmra.mxu0 %v555
    %v599 = vpop.f32.mrf.mxu0
    %v600 = vadd.f32 0.0, %v599
    %v601 = vpop.f32.mrf.mxu0
    %v602 = vpop.f32.mrf.mxu0
    %v603 = vadd.f32 0.0, %v602
    %v604 = vpop.f32.mrf.mxu0
    %605 = vdwg.mxu0
    %v606 = vadd.f32 %v498, %v592
    %v607 = vadd.f32 %v499, %v595
    %v608 = vadd.f32 %v500, %v600
    %v609 = vadd.f32 %v501, %v603
    %vm610 = vcmask 1045504
    %v611 = vrot.slane %v146, 2
    %v612 = vrot.slane %v149, 2
    %v613 = vsel %vm610, %v611, %v612
    %v614 = vrot.slane %v154, 2
    %v615 = vsel %vm610, %v612, %v614
    %v616 = vrot.slane %v157, 2
    %v617 = vsel %vm610, %v614, %v616
    %v623 = vsel %vm610, %v616, %v611
    %vm624 = vcmp.lt.s32.totalorder %v209, 14
    %vm625 = vcmp.lt.s32.totalorder %v210, 14
    %vm626 = vcmp.lt.s32.totalorder %v211, 14
    %vm627 = vcmp.lt.s32.totalorder %v212, 14
    %v628 = vsel %vm624, 1, 0
    %v629 = vsel %vm625, 1, 0
    %v630 = vsel %vm626, 1, 0
    %v631 = vsel %vm627, 1, 0
    %vm632 = vcmp.eq.s32.totalorder %v628, 1
    %vm633 = vcmp.eq.s32.totalorder %v629, 1
    %vm634 = vcmp.eq.s32.totalorder %v630, 1
    %vm635 = vcmp.eq.s32.totalorder %v631, 1
    %v636 = vsel %vm632, %v613, 0.0
    %v637 = vsel %vm633, %v615, 0.0
    %v638 = vsel %vm634, %v617, 0.0
    %v639 = vsel %vm635, %v623, 0.0
    %v640 = vpack.c.bf16 %v637, %v636
    %v641 = vpack.c.bf16 %v639, %v638
    %s642 = scalar_lea.vmem %s3, 64
    %v643 = vld [vmem:[%s642] sm:$0xf]
    %v644 = vld [vmem:[%s642 + $0x4] sm:$0xf]
    %v645 = vld [vmem:[%s642 + $0x8] sm:$0xf]
    %v646 = vld [vmem:[%s642 + $0xc] sm:$0xf]
    %v651 = vunpack.c.l.b16 %v643
    %v652 = vunpack.c.l.b16 %v644
    %v653 = vunpack.c.l.b16 %v645
    %v654 = vunpack.c.l.b16 %v646
    %v655 = vpack.c.b16 %v652, %v651
    %v656 = vpack.c.b16 %v654, %v653
    %v660 = vsel %vm301, %v640, 0
    %v663 = vsel %vm301, %v641, 0
    %665 = vmatprep.subr.bf16.mxu0 0
    %666 = vmatpush1.bf16.msra.mxu0 0
    %667 = vmatprep.subr.bf16.mxu0 0
    %668 = vmatpush1.bf16.msra.mxu0 0
    %669 = vmatprep.subr.bf16.mxu0 0
    %670 = vmatpush1.bf16.msra.mxu0 0
    %671 = vmatprep.subr.bf16.mxu0 0
    %672 = vmatpush1.bf16.msra.mxu0 0
    %673 = vmatprep.subr.bf16.mxu0 0
    %674 = vmatpush1.bf16.msra.mxu0 0
    %675 = vmatprep.subr.bf16.mxu0 0
    %676 = vmatpush1.bf16.msra.mxu0 0
    %677 = vmatprep.subr.bf16.mxu0 0
    %678 = vmatpush1.bf16.msra.mxu0 %v656
    %679 = vmatprep.subr.bf16.mxu0 0
    %680 = vmatpush1.bf16.msra.mxu0 %v655
    %681 = vmatprep.subr.bf16.mxu0 0
    %682 = vmatpush2.bf16.msra.mxu0 0
    %683 = vmatprep.subr.bf16.mxu0 0
    %684 = vmatpush2.bf16.msra.mxu0 0
    %685 = vmatprep.subr.bf16.mxu0 0
    %686 = vmatpush2.bf16.msra.mxu0 0
    %687 = vmatprep.subr.bf16.mxu0 0
    %688 = vmatpush2.bf16.msra.mxu0 0
    %689 = vmatprep.subr.bf16.mxu0 0
    %690 = vmatpush2.bf16.msra.mxu0 0
    %691 = vmatprep.subr.bf16.mxu0 0
    %692 = vmatpush2.bf16.msra.mxu0 0
    %693 = vmatprep.subr.bf16.mxu0 0
    %694 = vmatpush2.bf16.msra.mxu0 0
    %695 = vmatprep.subr.bf16.mxu0 0
    %696 = vmatpush2.bf16.msra.mxu0 0
    %697 = vmatprep.mubr.bf16.mxu0 0
    %698 = vmatmul.mubr.bf16.gmra.mxu0 %v660
    %v699 = vpop.f32.mrf.mxu0
    %v700 = vadd.f32 0.0, %v699
    %v701 = vpop.f32.mrf.mxu0
    %v702 = vpop.f32.mrf.mxu0
    %v703 = vadd.f32 0.0, %v702
    %v704 = vpop.f32.mrf.mxu0
    %705 = vmatprep.mubr.bf16.mxu0 0
    %706 = vmatmul.mubr.bf16.gmra.mxu0 %v663
    %v707 = vpop.f32.mrf.mxu0
    %v708 = vadd.f32 0.0, %v707
    %v709 = vpop.f32.mrf.mxu0
    %v710 = vpop.f32.mrf.mxu0
    %v711 = vadd.f32 0.0, %v710
    %v712 = vpop.f32.mrf.mxu0
    %713 = vdwg.mxu0
    %v714 = vadd.f32 %v606, %v700
    %v715 = vadd.f32 %v607, %v703
    %v716 = vadd.f32 %v608, %v708
    %v717 = vadd.f32 %v609, %v711
    %v718 = vld [vmem:[%s4] sm:$0x1]
    %v720 = vlaneseq
    %v721 = vshrl.u32 %v720, 7
    %v722 = vsub.s32 0, %v721
    %v723 = vrot.slane %v718, %v722
    %v725 = vadd.f32 %v714, %v723
    %v726 = vadd.f32 %v715, %v723
    %v727 = vadd.f32 %v716, %v723
    %v728 = vadd.f32 %v717, %v723
    %v729 = vtanh.pop %v725
    %v730 = vtanh.pop %v726
    %v731 = vtanh.pop %v727
    %v732 = vtanh.pop %v728
    %v733 = vpack.c.bf16 %v730, %v729
    %v734 = vpack.c.bf16 %v732, %v731
    %v735 = vld [vmem:[%s5] sm:$0xf]
    %v736 = vld [vmem:[%s5 + $0x4] sm:$0xf]
    %v737 = vld [vmem:[%s5 + $0x8] sm:$0xf]
    %v738 = vld [vmem:[%s5 + $0xc] sm:$0xf]
    %v739 = vld [vmem:[%s5 + $0x10] sm:$0xf]
    %v740 = vld [vmem:[%s5 + $0x14] sm:$0xf]
    %v741 = vld [vmem:[%s5 + $0x18] sm:$0xf]
    %v742 = vld [vmem:[%s5 + $0x1c] sm:$0xf]
    %v751 = vunpack.c.l.b16 %v735
    %v752 = vunpack.c.l.b16 %v736
    %v753 = vunpack.c.l.b16 %v737
    %v754 = vunpack.c.l.b16 %v738
    %v755 = vunpack.c.l.b16 %v739
    %v756 = vunpack.c.l.b16 %v740
    %v757 = vunpack.c.l.b16 %v741
    %v758 = vunpack.c.l.b16 %v742
    %v759 = vpack.c.b16 %v752, %v751
    %v760 = vpack.c.b16 %v754, %v753
    %v761 = vpack.c.b16 %v756, %v755
    %v762 = vpack.c.b16 %v758, %v757
    %vm767 = vcmask 523264
    %v769 = vsel %vm767, %v733, 0
    %v772 = vsel %vm767, %v734, 0
    %774 = vmatprep.subr.bf16.mxu0 0
    %775 = vmatpush1.bf16.msra.mxu0 0
    %776 = vmatprep.subr.bf16.mxu0 0
    %777 = vmatpush1.bf16.msra.mxu0 0
    %778 = vmatprep.subr.bf16.mxu0 0
    %779 = vmatpush1.bf16.msra.mxu0 0
    %780 = vmatprep.subr.bf16.mxu0 0
    %781 = vmatpush1.bf16.msra.mxu0 0
    %782 = vmatprep.subr.bf16.mxu0 0
    %783 = vmatpush1.bf16.msra.mxu0 %v762
    %784 = vmatprep.subr.bf16.mxu0 0
    %785 = vmatpush1.bf16.msra.mxu0 %v761
    %786 = vmatprep.subr.bf16.mxu0 0
    %787 = vmatpush1.bf16.msra.mxu0 %v760
    %788 = vmatprep.subr.bf16.mxu0 0
    %789 = vmatpush1.bf16.msra.mxu0 %v759
    %790 = vmatprep.subr.bf16.mxu0 0
    %791 = vmatpush2.bf16.msra.mxu0 0
    %792 = vmatprep.subr.bf16.mxu0 0
    %793 = vmatpush2.bf16.msra.mxu0 0
    %794 = vmatprep.subr.bf16.mxu0 0
    %795 = vmatpush2.bf16.msra.mxu0 0
    %796 = vmatprep.subr.bf16.mxu0 0
    %797 = vmatpush2.bf16.msra.mxu0 0
    %798 = vmatprep.subr.bf16.mxu0 0
    %799 = vmatpush2.bf16.msra.mxu0 0
    %800 = vmatprep.subr.bf16.mxu0 0
    %801 = vmatpush2.bf16.msra.mxu0 0
    %802 = vmatprep.subr.bf16.mxu0 0
    %803 = vmatpush2.bf16.msra.mxu0 0
    %804 = vmatprep.subr.bf16.mxu0 0
    %805 = vmatpush2.bf16.msra.mxu0 0
    %806 = vmatprep.mubr.bf16.mxu0 0
    %807 = vmatmul.mubr.bf16.gmra.mxu0 %v769
    %v808 = vpop.f32.mrf.mxu0
    %v809 = vadd.f32 0.0, %v808
    %v810 = vpop.f32.mrf.mxu0
    %v811 = vpop.f32.mrf.mxu0
    %v812 = vadd.f32 0.0, %v811
    %v813 = vpop.f32.mrf.mxu0
    %814 = vmatprep.mubr.bf16.mxu0 0
    %815 = vmatmul.mubr.bf16.gmra.mxu0 %v772
    %v816 = vpop.f32.mrf.mxu0
    %v817 = vadd.f32 0.0, %v816
    %v818 = vpop.f32.mrf.mxu0
    %v819 = vpop.f32.mrf.mxu0
    %v820 = vadd.f32 0.0, %v819
    %v821 = vpop.f32.mrf.mxu0
    %822 = vdwg.mxu0
    %v824 = vrot.slane %v732, 6
    %v829 = vrot.slane %v729, 6
    %v830 = vrot.slane %v730, 6
    %v831 = vsel %vm107, %v829, %v830
    %v832 = vrot.slane %v731, 6
    %v833 = vsel %vm107, %v830, %v832
    %v834 = vsel %vm107, %v832, %v824
    %v839 = vsel %vm107, %v824, %v829
    %v840 = vsel %vm238, %v839, 0.0
    %v841 = vsel %vm239, %v831, 0.0
    %v842 = vsel %vm240, %v833, 0.0
    %v843 = vsel %vm241, %v834, 0.0
    %v844 = vpack.c.bf16 %v841, %v840
    %v845 = vpack.c.bf16 %v843, %v842
    %v846 = vld [vmem:[%s6] sm:$0xf]
    %v847 = vld [vmem:[%s6 + $0x4] sm:$0xf]
    %v848 = vld [vmem:[%s6 + $0x8] sm:$0xf]
    %v849 = vld [vmem:[%s6 + $0xc] sm:$0xf]
    %v850 = vld [vmem:[%s6 + $0x10] sm:$0xf]
    %v851 = vld [vmem:[%s6 + $0x14] sm:$0xf]
    %v852 = vld [vmem:[%s6 + $0x18] sm:$0xf]
    %v853 = vld [vmem:[%s6 + $0x1c] sm:$0xf]
    %v854 = vrot.slane %v732, 7
    %v856 = vrot.slane %v729, 7
    %v857 = vrot.slane %v730, 7
    %v858 = vsel %vm254, %v856, %v857
    %v859 = vrot.slane %v731, 7
    %v860 = vsel %vm254, %v857, %v859
    %v861 = vsel %vm254, %v859, %v854
    %v866 = vsel %vm254, %v854, %v856
    %v867 = vsel %vm274, %v866, 0.0
    %v868 = vsel %vm275, %v858, 0.0
    %v869 = vsel %vm276, %v860, 0.0
    %v870 = vsel %vm277, %v861, 0.0
    %v871 = vpack.c.bf16 %v868, %v867
    %v872 = vpack.c.bf16 %v870, %v869
    %s873 = scalar_lea.vmem %s6, 32
    %v874 = vld [vmem:[%s873] sm:$0xf]
    %v875 = vld [vmem:[%s873 + $0x4] sm:$0xf]
    %v876 = vld [vmem:[%s873 + $0x8] sm:$0xf]
    %v877 = vld [vmem:[%s873 + $0xc] sm:$0xf]
    %v878 = vld [vmem:[%s873 + $0x10] sm:$0xf]
    %v879 = vld [vmem:[%s873 + $0x14] sm:$0xf]
    %v880 = vld [vmem:[%s873 + $0x18] sm:$0xf]
    %v881 = vld [vmem:[%s873 + $0x1c] sm:$0xf]
    %v890 = vunpack.c.l.b16 %v874
    %v891 = vunpack.c.l.b16 %v875
    %v892 = vunpack.c.l.b16 %v876
    %v893 = vunpack.c.l.b16 %v877
    %v894 = vunpack.c.l.b16 %v878
    %v895 = vunpack.c.l.b16 %v879
    %v896 = vunpack.c.l.b16 %v880
    %v897 = vunpack.c.l.b16 %v881
    %v898 = vpack.c.b16 %v891, %v890
    %v899 = vpack.c.b16 %v893, %v892
    %v900 = vpack.c.b16 %v895, %v894
    %v901 = vpack.c.b16 %v897, %v896
    %v907 = vsel %vm767, %v871, 0
    %v910 = vsel %vm767, %v872, 0
    %912 = vmatprep.subr.bf16.mxu0 0
    %913 = vmatpush1.bf16.msra.mxu0 0
    %914 = vmatprep.subr.bf16.mxu0 0
    %915 = vmatpush1.bf16.msra.mxu0 0
    %916 = vmatprep.subr.bf16.mxu0 0
    %917 = vmatpush1.bf16.msra.mxu0 0
    %918 = vmatprep.subr.bf16.mxu0 0
    %919 = vmatpush1.bf16.msra.mxu0 0
    %920 = vmatprep.subr.bf16.mxu0 0
    %921 = vmatpush1.bf16.msra.mxu0 %v901
    %922 = vmatprep.subr.bf16.mxu0 0
    %923 = vmatpush1.bf16.msra.mxu0 %v900
    %924 = vmatprep.subr.bf16.mxu0 0
    %925 = vmatpush1.bf16.msra.mxu0 %v899
    %926 = vmatprep.subr.bf16.mxu0 0
    %927 = vmatpush1.bf16.msra.mxu0 %v898
    %928 = vmatprep.subr.bf16.mxu0 0
    %929 = vmatpush2.bf16.msra.mxu0 0
    %930 = vmatprep.subr.bf16.mxu0 0
    %931 = vmatpush2.bf16.msra.mxu0 0
    %932 = vmatprep.subr.bf16.mxu0 0
    %933 = vmatpush2.bf16.msra.mxu0 0
    %934 = vmatprep.subr.bf16.mxu0 0
    %935 = vmatpush2.bf16.msra.mxu0 0
    %936 = vmatprep.subr.bf16.mxu0 0
    %937 = vmatpush2.bf16.msra.mxu0 0
    %938 = vmatprep.subr.bf16.mxu0 0
    %939 = vmatpush2.bf16.msra.mxu0 0
    %940 = vmatprep.subr.bf16.mxu0 0
    %941 = vmatpush2.bf16.msra.mxu0 0
    %942 = vmatprep.subr.bf16.mxu0 0
    %943 = vmatpush2.bf16.msra.mxu0 0
    %944 = vmatprep.mubr.bf16.mxu0 0
    %945 = vmatmul.mubr.bf16.gmra.mxu0 %v907
    %v946 = vpop.f32.mrf.mxu0
    %v947 = vadd.f32 0.0, %v946
    %v948 = vpop.f32.mrf.mxu0
    %v949 = vpop.f32.mrf.mxu0
    %v950 = vadd.f32 0.0, %v949
    %v951 = vpop.f32.mrf.mxu0
    %952 = vmatprep.mubr.bf16.mxu0 0
    %953 = vmatmul.mubr.bf16.gmra.mxu0 %v910
    %v954 = vpop.f32.mrf.mxu0
    %v955 = vadd.f32 0.0, %v954
    %v956 = vpop.f32.mrf.mxu0
    %v957 = vpop.f32.mrf.mxu0
    %v958 = vadd.f32 0.0, %v957
    %v959 = vpop.f32.mrf.mxu0
    %960 = vdwg.mxu0
    %v969 = vunpack.c.l.b16 %v846
    %v970 = vunpack.c.l.b16 %v847
    %v971 = vunpack.c.l.b16 %v848
    %v972 = vunpack.c.l.b16 %v849
    %v973 = vunpack.c.l.b16 %v850
    %v974 = vunpack.c.l.b16 %v851
    %v975 = vunpack.c.l.b16 %v852
    %v976 = vunpack.c.l.b16 %v853
    %v977 = vpack.c.b16 %v970, %v969
    %v978 = vpack.c.b16 %v972, %v971
    %v979 = vpack.c.b16 %v974, %v973
    %v980 = vpack.c.b16 %v976, %v975
    %v986 = vsel %vm767, %v844, 0
    %v989 = vsel %vm767, %v845, 0
    %991 = vmatprep.subr.bf16.mxu0 0
    %992 = vmatpush1.bf16.msra.mxu0 0
    %993 = vmatprep.subr.bf16.mxu0 0
    %994 = vmatpush1.bf16.msra.mxu0 0
    %995 = vmatprep.subr.bf16.mxu0 0
    %996 = vmatpush1.bf16.msra.mxu0 0
    %997 = vmatprep.subr.bf16.mxu0 0
    %998 = vmatpush1.bf16.msra.mxu0 0
    %999 = vmatprep.subr.bf16.mxu0 0
    %1000 = vmatpush1.bf16.msra.mxu0 %v980
    %1001 = vmatprep.subr.bf16.mxu0 0
    %1002 = vmatpush1.bf16.msra.mxu0 %v979
    %1003 = vmatprep.subr.bf16.mxu0 0
    %1004 = vmatpush1.bf16.msra.mxu0 %v978
    %1005 = vmatprep.subr.bf16.mxu0 0
    %1006 = vmatpush1.bf16.msra.mxu0 %v977
    %1007 = vmatprep.subr.bf16.mxu0 0
    %1008 = vmatpush2.bf16.msra.mxu0 0
    %1009 = vmatprep.subr.bf16.mxu0 0
    %1010 = vmatpush2.bf16.msra.mxu0 0
    %1011 = vmatprep.subr.bf16.mxu0 0
    %1012 = vmatpush2.bf16.msra.mxu0 0
    %1013 = vmatprep.subr.bf16.mxu0 0
    %1014 = vmatpush2.bf16.msra.mxu0 0
    %1015 = vmatprep.subr.bf16.mxu0 0
    %1016 = vmatpush2.bf16.msra.mxu0 0
    %1017 = vmatprep.subr.bf16.mxu0 0
    %1018 = vmatpush2.bf16.msra.mxu0 0
    %1019 = vmatprep.subr.bf16.mxu0 0
    %1020 = vmatpush2.bf16.msra.mxu0 0
    %1021 = vmatprep.subr.bf16.mxu0 0
    %1022 = vmatpush2.bf16.msra.mxu0 0
    %1023 = vmatprep.mubr.bf16.mxu0 0
    %1024 = vmatmul.mubr.bf16.gmra.mxu0 %v986
    %v1025 = vpop.f32.mrf.mxu0
    %v1026 = vadd.f32 %v947, %v1025
    %v1027 = vpop.f32.mrf.mxu0
    %v1028 = vpop.f32.mrf.mxu0
    %v1029 = vadd.f32 %v950, %v1028
    %v1030 = vpop.f32.mrf.mxu0
    %1031 = vmatprep.mubr.bf16.mxu0 0
    %1032 = vmatmul.mubr.bf16.gmra.mxu0 %v989
    %v1033 = vpop.f32.mrf.mxu0
    %v1034 = vadd.f32 %v955, %v1033
    %v1035 = vpop.f32.mrf.mxu0
    %v1036 = vpop.f32.mrf.mxu0
    %v1037 = vadd.f32 %v958, %v1036
    %v1038 = vpop.f32.mrf.mxu0
    %1039 = vdwg.mxu0
    %s1040 = scalar_lea.vmem %s6, 64
    %v1041 = vld [vmem:[%s1040] sm:$0xf]
    %v1042 = vld [vmem:[%s1040 + $0x4] sm:$0xf]
    %v1043 = vld [vmem:[%s1040 + $0x8] sm:$0xf]
    %v1044 = vld [vmem:[%s1040 + $0xc] sm:$0xf]
    %v1045 = vld [vmem:[%s1040 + $0x10] sm:$0xf]
    %v1046 = vld [vmem:[%s1040 + $0x14] sm:$0xf]
    %v1047 = vld [vmem:[%s1040 + $0x18] sm:$0xf]
    %v1048 = vld [vmem:[%s1040 + $0x1c] sm:$0xf]
    %v1057 = vunpack.c.l.b16 %v1041
    %v1058 = vunpack.c.l.b16 %v1042
    %v1059 = vunpack.c.l.b16 %v1043
    %v1060 = vunpack.c.l.b16 %v1044
    %v1061 = vunpack.c.l.b16 %v1045
    %v1062 = vunpack.c.l.b16 %v1046
    %v1063 = vunpack.c.l.b16 %v1047
    %v1064 = vunpack.c.l.b16 %v1048
    %v1065 = vpack.c.b16 %v1058, %v1057
    %v1066 = vpack.c.b16 %v1060, %v1059
    %v1067 = vpack.c.b16 %v1062, %v1061
    %v1068 = vpack.c.b16 %v1064, %v1063
    %1073 = vmatprep.subr.bf16.mxu0 0
    %1074 = vmatpush1.bf16.msra.mxu0 0
    %1075 = vmatprep.subr.bf16.mxu0 0
    %1076 = vmatpush1.bf16.msra.mxu0 0
    %1077 = vmatprep.subr.bf16.mxu0 0
    %1078 = vmatpush1.bf16.msra.mxu0 0
    %1079 = vmatprep.subr.bf16.mxu0 0
    %1080 = vmatpush1.bf16.msra.mxu0 0
    %1081 = vmatprep.subr.bf16.mxu0 0
    %1082 = vmatpush1.bf16.msra.mxu0 %v1068
    %1083 = vmatprep.subr.bf16.mxu0 0
    %1084 = vmatpush1.bf16.msra.mxu0 %v1067
    %1085 = vmatprep.subr.bf16.mxu0 0
    %1086 = vmatpush1.bf16.msra.mxu0 %v1066
    %1087 = vmatprep.subr.bf16.mxu0 0
    %1088 = vmatpush1.bf16.msra.mxu0 %v1065
    %1089 = vmatprep.subr.bf16.mxu0 0
    %1090 = vmatpush2.bf16.msra.mxu0 0
    %1091 = vmatprep.subr.bf16.mxu0 0
    %1092 = vmatpush2.bf16.msra.mxu0 0
    %1093 = vmatprep.subr.bf16.mxu0 0
    %1094 = vmatpush2.bf16.msra.mxu0 0
    %1095 = vmatprep.subr.bf16.mxu0 0
    %1096 = vmatpush2.bf16.msra.mxu0 0
    %1097 = vmatprep.subr.bf16.mxu0 0
    %1098 = vmatpush2.bf16.msra.mxu0 0
    %1099 = vmatprep.subr.bf16.mxu0 0
    %1100 = vmatpush2.bf16.msra.mxu0 0
    %1101 = vmatprep.subr.bf16.mxu0 0
    %1102 = vmatpush2.bf16.msra.mxu0 0
    %1103 = vmatprep.subr.bf16.mxu0 0
    %1104 = vmatpush2.bf16.msra.mxu0 0
    %1105 = vmatprep.mubr.bf16.mxu0 0
    %1106 = vmatmul.mubr.bf16.gmra.mxu0 %v769
    %v1107 = vpop.f32.mrf.mxu0
    %v1108 = vadd.f32 0.0, %v1107
    %v1109 = vpop.f32.mrf.mxu0
    %v1110 = vpop.f32.mrf.mxu0
    %v1111 = vadd.f32 0.0, %v1110
    %v1112 = vpop.f32.mrf.mxu0
    %1113 = vmatprep.mubr.bf16.mxu0 0
    %1114 = vmatmul.mubr.bf16.gmra.mxu0 %v772
    %v1115 = vpop.f32.mrf.mxu0
    %v1116 = vadd.f32 0.0, %v1115
    %v1117 = vpop.f32.mrf.mxu0
    %v1118 = vpop.f32.mrf.mxu0
    %v1119 = vadd.f32 0.0, %v1118
    %v1120 = vpop.f32.mrf.mxu0
    %1121 = vdwg.mxu0
    %v1122 = vadd.f32 %v1026, %v1108
    %v1123 = vadd.f32 %v1029, %v1111
    %v1124 = vadd.f32 %v1034, %v1116
    %v1125 = vadd.f32 %v1037, %v1119
    %v1126 = vrot.slane %v729, 1
    %v1127 = vrot.slane %v730, 1
    %v1128 = vsel %vm502, %v1126, %v1127
    %v1129 = vrot.slane %v731, 1
    %v1130 = vsel %vm502, %v1127, %v1129
    %v1131 = vrot.slane %v732, 1
    %v1132 = vsel %vm502, %v1129, %v1131
    %v1138 = vsel %vm502, %v1131, %v1126
    %v1139 = vsel %vm524, %v1128, 0.0
    %v1140 = vsel %vm525, %v1130, 0.0
    %v1141 = vsel %vm526, %v1132, 0.0
    %v1142 = vsel %vm527, %v1138, 0.0
    %v1143 = vpack.c.bf16 %v1140, %v1139
    %v1144 = vpack.c.bf16 %v1142, %v1141
    %s1145 = scalar_lea.vmem %s6, 96
    %v1146 = vld [vmem:[%s1145] sm:$0xf]
    %v1147 = vld [vmem:[%s1145 + $0x4] sm:$0xf]
    %v1148 = vld [vmem:[%s1145 + $0x8] sm:$0xf]
    %v1149 = vld [vmem:[%s1145 + $0xc] sm:$0xf]
    %v1150 = vld [vmem:[%s1145 + $0x10] sm:$0xf]
    %v1151 = vld [vmem:[%s1145 + $0x14] sm:$0xf]
    %v1152 = vld [vmem:[%s1145 + $0x18] sm:$0xf]
    %v1153 = vld [vmem:[%s1145 + $0x1c] sm:$0xf]
    %v1162 = vunpack.c.l.b16 %v1146
    %v1163 = vunpack.c.l.b16 %v1147
    %v1164 = vunpack.c.l.b16 %v1148
    %v1165 = vunpack.c.l.b16 %v1149
    %v1166 = vunpack.c.l.b16 %v1150
    %v1167 = vunpack.c.l.b16 %v1151
    %v1168 = vunpack.c.l.b16 %v1152
    %v1169 = vunpack.c.l.b16 %v1153
    %v1170 = vpack.c.b16 %v1163, %v1162
    %v1171 = vpack.c.b16 %v1165, %v1164
    %v1172 = vpack.c.b16 %v1167, %v1166
    %v1173 = vpack.c.b16 %v1169, %v1168
    %v1179 = vsel %vm767, %v1143, 0
    %v1182 = vsel %vm767, %v1144, 0
    %1184 = vmatprep.subr.bf16.mxu0 0
    %1185 = vmatpush1.bf16.msra.mxu0 0
    %1186 = vmatprep.subr.bf16.mxu0 0
    %1187 = vmatpush1.bf16.msra.mxu0 0
    %1188 = vmatprep.subr.bf16.mxu0 0
    %1189 = vmatpush1.bf16.msra.mxu0 0
    %1190 = vmatprep.subr.bf16.mxu0 0
    %1191 = vmatpush1.bf16.msra.mxu0 0
    %1192 = vmatprep.subr.bf16.mxu0 0
    %1193 = vmatpush1.bf16.msra.mxu0 %v1173
    %1194 = vmatprep.subr.bf16.mxu0 0
    %1195 = vmatpush1.bf16.msra.mxu0 %v1172
    %1196 = vmatprep.subr.bf16.mxu0 0
    %1197 = vmatpush1.bf16.msra.mxu0 %v1171
    %1198 = vmatprep.subr.bf16.mxu0 0
    %1199 = vmatpush1.bf16.msra.mxu0 %v1170
    %1200 = vmatprep.subr.bf16.mxu0 0
    %1201 = vmatpush2.bf16.msra.mxu0 0
    %1202 = vmatprep.subr.bf16.mxu0 0
    %1203 = vmatpush2.bf16.msra.mxu0 0
    %1204 = vmatprep.subr.bf16.mxu0 0
    %1205 = vmatpush2.bf16.msra.mxu0 0
    %1206 = vmatprep.subr.bf16.mxu0 0
    %1207 = vmatpush2.bf16.msra.mxu0 0
    %1208 = vmatprep.subr.bf16.mxu0 0
    %1209 = vmatpush2.bf16.msra.mxu0 0
    %1210 = vmatprep.subr.bf16.mxu0 0
    %1211 = vmatpush2.bf16.msra.mxu0 0
    %1212 = vmatprep.subr.bf16.mxu0 0
    %1213 = vmatpush2.bf16.msra.mxu0 0
    %1214 = vmatprep.subr.bf16.mxu0 0
    %1215 = vmatpush2.bf16.msra.mxu0 0
    %1216 = vmatprep.mubr.bf16.mxu0 0
    %1217 = vmatmul.mubr.bf16.gmra.mxu0 %v1179
    %v1218 = vpop.f32.mrf.mxu0
    %v1219 = vadd.f32 0.0, %v1218
    %v1220 = vpop.f32.mrf.mxu0
    %v1221 = vpop.f32.mrf.mxu0
    %v1222 = vadd.f32 0.0, %v1221
    %v1223 = vpop.f32.mrf.mxu0
    %1224 = vmatprep.mubr.bf16.mxu0 0
    %1225 = vmatmul.mubr.bf16.gmra.mxu0 %v1182
    %v1226 = vpop.f32.mrf.mxu0
    %v1227 = vadd.f32 0.0, %v1226
    %v1228 = vpop.f32.mrf.mxu0
    %v1229 = vpop.f32.mrf.mxu0
    %v1230 = vadd.f32 0.0, %v1229
    %v1231 = vpop.f32.mrf.mxu0
    %1232 = vdwg.mxu0
    %v1233 = vadd.f32 %v1122, %v1219
    %v1234 = vadd.f32 %v1123, %v1222
    %v1235 = vadd.f32 %v1124, %v1227
    %v1236 = vadd.f32 %v1125, %v1230
    %v1237 = vrot.slane %v729, 2
    %v1238 = vrot.slane %v730, 2
    %v1239 = vsel %vm610, %v1237, %v1238
    %v1240 = vrot.slane %v731, 2
    %v1241 = vsel %vm610, %v1238, %v1240
    %v1242 = vrot.slane %v732, 2
    %v1243 = vsel %vm610, %v1240, %v1242
    %v1249 = vsel %vm610, %v1242, %v1237
    %v1250 = vsel %vm632, %v1239, 0.0
    %v1251 = vsel %vm633, %v1241, 0.0
    %v1252 = vsel %vm634, %v1243, 0.0
    %v1253 = vsel %vm635, %v1249, 0.0
    %v1254 = vpack.c.bf16 %v1251, %v1250
    %v1255 = vpack.c.bf16 %v1253, %v1252
    %s1256 = scalar_lea.vmem %s6, 128
    %v1257 = vld [vmem:[%s1256] sm:$0xf]
    %v1258 = vld [vmem:[%s1256 + $0x4] sm:$0xf]
    %v1259 = vld [vmem:[%s1256 + $0x8] sm:$0xf]
    %v1260 = vld [vmem:[%s1256 + $0xc] sm:$0xf]
    %v1261 = vld [vmem:[%s1256 + $0x10] sm:$0xf]
    %v1262 = vld [vmem:[%s1256 + $0x14] sm:$0xf]
    %v1263 = vld [vmem:[%s1256 + $0x18] sm:$0xf]
    %v1264 = vld [vmem:[%s1256 + $0x1c] sm:$0xf]
    %v1273 = vunpack.c.l.b16 %v1257
    %v1274 = vunpack.c.l.b16 %v1258
    %v1275 = vunpack.c.l.b16 %v1259
    %v1276 = vunpack.c.l.b16 %v1260
    %v1277 = vunpack.c.l.b16 %v1261
    %v1278 = vunpack.c.l.b16 %v1262
    %v1279 = vunpack.c.l.b16 %v1263
    %v1280 = vunpack.c.l.b16 %v1264
    %v1281 = vpack.c.b16 %v1274, %v1273
    %v1282 = vpack.c.b16 %v1276, %v1275
    %v1283 = vpack.c.b16 %v1278, %v1277
    %v1284 = vpack.c.b16 %v1280, %v1279
    %v1290 = vsel %vm767, %v1254, 0
    %v1293 = vsel %vm767, %v1255, 0
    %1295 = vmatprep.subr.bf16.mxu0 0
    %1296 = vmatpush1.bf16.msra.mxu0 0
    %1297 = vmatprep.subr.bf16.mxu0 0
    %1298 = vmatpush1.bf16.msra.mxu0 0
    %1299 = vmatprep.subr.bf16.mxu0 0
    %1300 = vmatpush1.bf16.msra.mxu0 0
    %1301 = vmatprep.subr.bf16.mxu0 0
    %1302 = vmatpush1.bf16.msra.mxu0 0
    %1303 = vmatprep.subr.bf16.mxu0 0
    %1304 = vmatpush1.bf16.msra.mxu0 %v1284
    %1305 = vmatprep.subr.bf16.mxu0 0
    %1306 = vmatpush1.bf16.msra.mxu0 %v1283
    %1307 = vmatprep.subr.bf16.mxu0 0
    %1308 = vmatpush1.bf16.msra.mxu0 %v1282
    %1309 = vmatprep.subr.bf16.mxu0 0
    %1310 = vmatpush1.bf16.msra.mxu0 %v1281
    %1311 = vmatprep.subr.bf16.mxu0 0
    %1312 = vmatpush2.bf16.msra.mxu0 0
    %1313 = vmatprep.subr.bf16.mxu0 0
    %1314 = vmatpush2.bf16.msra.mxu0 0
    %1315 = vmatprep.subr.bf16.mxu0 0
    %1316 = vmatpush2.bf16.msra.mxu0 0
    %1317 = vmatprep.subr.bf16.mxu0 0
    %1318 = vmatpush2.bf16.msra.mxu0 0
    %1319 = vmatprep.subr.bf16.mxu0 0
    %1320 = vmatpush2.bf16.msra.mxu0 0
    %1321 = vmatprep.subr.bf16.mxu0 0
    %1322 = vmatpush2.bf16.msra.mxu0 0
    %1323 = vmatprep.subr.bf16.mxu0 0
    %1324 = vmatpush2.bf16.msra.mxu0 0
    %1325 = vmatprep.subr.bf16.mxu0 0
    %1326 = vmatpush2.bf16.msra.mxu0 0
    %1327 = vmatprep.mubr.bf16.mxu0 0
    %1328 = vmatmul.mubr.bf16.gmra.mxu0 %v1290
    %v1329 = vpop.f32.mrf.mxu0
    %v1330 = vadd.f32 0.0, %v1329
    %v1331 = vpop.f32.mrf.mxu0
    %v1332 = vpop.f32.mrf.mxu0
    %v1333 = vadd.f32 0.0, %v1332
    %v1334 = vpop.f32.mrf.mxu0
    %1335 = vmatprep.mubr.bf16.mxu0 0
    %1336 = vmatmul.mubr.bf16.gmra.mxu0 %v1293
    %v1337 = vpop.f32.mrf.mxu0
    %v1338 = vadd.f32 0.0, %v1337
    %v1339 = vpop.f32.mrf.mxu0
    %v1340 = vpop.f32.mrf.mxu0
    %v1341 = vadd.f32 0.0, %v1340
    %v1342 = vpop.f32.mrf.mxu0
    %1343 = vdwg.mxu0
    %v1344 = vadd.f32 %v1233, %v1330
    %v1345 = vadd.f32 %v1234, %v1333
    %v1346 = vadd.f32 %v1235, %v1338
    %v1347 = vadd.f32 %v1236, %v1341
    %v1348 = vtanh.pop %v1344
    %v1349 = vtanh.pop %v1345
    %v1350 = vtanh.pop %v1346
    %v1351 = vtanh.pop %v1347
    %v1353 = vrot.slane %v1351, 6
    %v1358 = vrot.slane %v1348, 6
    %v1359 = vrot.slane %v1349, 6
    %v1360 = vsel %vm107, %v1358, %v1359
    %v1361 = vrot.slane %v1350, 6
    %v1362 = vsel %vm107, %v1359, %v1361
    %v1363 = vsel %vm107, %v1361, %v1353
    %v1368 = vsel %vm107, %v1353, %v1358
    %v1369 = vsel %vm238, %v1368, 0.0
    %v1370 = vsel %vm239, %v1360, 0.0
    %v1371 = vsel %vm240, %v1362, 0.0
    %v1372 = vsel %vm241, %v1363, 0.0
    %v1373 = vpack.c.bf16 %v1370, %v1369
    %v1374 = vpack.c.bf16 %v1372, %v1371
    %v1375 = vld [vmem:[%s7] sm:$0xf]
    %v1376 = vld [vmem:[%s7 + $0x4] sm:$0xf]
    %v1377 = vld [vmem:[%s7 + $0x8] sm:$0xf]
    %v1378 = vld [vmem:[%s7 + $0xc] sm:$0xf]
    %v1379 = vrot.slane %v1351, 7
    %v1381 = vrot.slane %v1348, 7
    %v1382 = vrot.slane %v1349, 7
    %v1383 = vsel %vm254, %v1381, %v1382
    %v1384 = vrot.slane %v1350, 7
    %v1385 = vsel %vm254, %v1382, %v1384
    %v1386 = vsel %vm254, %v1384, %v1379
    %v1391 = vsel %vm254, %v1379, %v1381
    %v1392 = vsel %vm274, %v1391, 0.0
    %v1393 = vsel %vm275, %v1383, 0.0
    %v1394 = vsel %vm276, %v1385, 0.0
    %v1395 = vsel %vm277, %v1386, 0.0
    %v1396 = vpack.c.bf16 %v1393, %v1392
    %v1397 = vpack.c.bf16 %v1395, %v1394
    %s1398 = scalar_lea.vmem %s7, 16
    %v1399 = vld [vmem:[%s1398] sm:$0xf]
    %v1400 = vld [vmem:[%s1398 + $0x4] sm:$0xf]
    %v1401 = vld [vmem:[%s1398 + $0x8] sm:$0xf]
    %v1402 = vld [vmem:[%s1398 + $0xc] sm:$0xf]
    %v1407 = vunpack.c.l.b16 %v1399
    %v1408 = vunpack.c.l.b16 %v1400
    %v1409 = vunpack.c.l.b16 %v1401
    %v1410 = vunpack.c.l.b16 %v1402
    %v1411 = vpack.c.b16 %v1408, %v1407
    %v1412 = vpack.c.b16 %v1410, %v1409
    %v1416 = vsel %vm301, %v1396, 0
    %v1419 = vsel %vm301, %v1397, 0
    %1421 = vmatprep.subr.bf16.mxu0 0
    %1422 = vmatpush1.bf16.msra.mxu0 0
    %1423 = vmatprep.subr.bf16.mxu0 0
    %1424 = vmatpush1.bf16.msra.mxu0 0
    %1425 = vmatprep.subr.bf16.mxu0 0
    %1426 = vmatpush1.bf16.msra.mxu0 0
    %1427 = vmatprep.subr.bf16.mxu0 0
    %1428 = vmatpush1.bf16.msra.mxu0 0
    %1429 = vmatprep.subr.bf16.mxu0 0
    %1430 = vmatpush1.bf16.msra.mxu0 0
    %1431 = vmatprep.subr.bf16.mxu0 0
    %1432 = vmatpush1.bf16.msra.mxu0 0
    %1433 = vmatprep.subr.bf16.mxu0 0
    %1434 = vmatpush1.bf16.msra.mxu0 %v1412
    %1435 = vmatprep.subr.bf16.mxu0 0
    %1436 = vmatpush1.bf16.msra.mxu0 %v1411
    %1437 = vmatprep.subr.bf16.mxu0 0
    %1438 = vmatpush2.bf16.msra.mxu0 0
    %1439 = vmatprep.subr.bf16.mxu0 0
    %1440 = vmatpush2.bf16.msra.mxu0 0
    %1441 = vmatprep.subr.bf16.mxu0 0
    %1442 = vmatpush2.bf16.msra.mxu0 0
    %1443 = vmatprep.subr.bf16.mxu0 0
    %1444 = vmatpush2.bf16.msra.mxu0 0
    %1445 = vmatprep.subr.bf16.mxu0 0
    %1446 = vmatpush2.bf16.msra.mxu0 0
    %1447 = vmatprep.subr.bf16.mxu0 0
    %1448 = vmatpush2.bf16.msra.mxu0 0
    %1449 = vmatprep.subr.bf16.mxu0 0
    %1450 = vmatpush2.bf16.msra.mxu0 0
    %1451 = vmatprep.subr.bf16.mxu0 0
    %1452 = vmatpush2.bf16.msra.mxu0 0
    %1453 = vmatprep.mubr.bf16.mxu0 0
    %1454 = vmatmul.mubr.bf16.gmra.mxu0 %v1416
    %v1455 = vpop.f32.mrf.mxu0
    %v1456 = vadd.f32 0.0, %v1455
    %v1457 = vpop.f32.mrf.mxu0
    %v1458 = vpop.f32.mrf.mxu0
    %v1459 = vadd.f32 0.0, %v1458
    %v1460 = vpop.f32.mrf.mxu0
    %1461 = vmatprep.mubr.bf16.mxu0 0
    %1462 = vmatmul.mubr.bf16.gmra.mxu0 %v1419
    %v1463 = vpop.f32.mrf.mxu0
    %v1464 = vadd.f32 0.0, %v1463
    %v1465 = vpop.f32.mrf.mxu0
    %v1466 = vpop.f32.mrf.mxu0
    %v1467 = vadd.f32 0.0, %v1466
    %v1468 = vpop.f32.mrf.mxu0
    %1469 = vdwg.mxu0
    %v1474 = vunpack.c.l.b16 %v1375
    %v1475 = vunpack.c.l.b16 %v1376
    %v1476 = vunpack.c.l.b16 %v1377
    %v1477 = vunpack.c.l.b16 %v1378
    %v1478 = vpack.c.b16 %v1475, %v1474
    %v1479 = vpack.c.b16 %v1477, %v1476
    %v1483 = vsel %vm301, %v1373, 0
    %v1486 = vsel %vm301, %v1374, 0
    %1488 = vmatprep.subr.bf16.mxu0 0
    %1489 = vmatpush1.bf16.msra.mxu0 0
    %1490 = vmatprep.subr.bf16.mxu0 0
    %1491 = vmatpush1.bf16.msra.mxu0 0
    %1492 = vmatprep.subr.bf16.mxu0 0
    %1493 = vmatpush1.bf16.msra.mxu0 0
    %1494 = vmatprep.subr.bf16.mxu0 0
    %1495 = vmatpush1.bf16.msra.mxu0 0
    %1496 = vmatprep.subr.bf16.mxu0 0
    %1497 = vmatpush1.bf16.msra.mxu0 0
    %1498 = vmatprep.subr.bf16.mxu0 0
    %1499 = vmatpush1.bf16.msra.mxu0 0
    %1500 = vmatprep.subr.bf16.mxu0 0
    %1501 = vmatpush1.bf16.msra.mxu0 %v1479
    %1502 = vmatprep.subr.bf16.mxu0 0
    %1503 = vmatpush1.bf16.msra.mxu0 %v1478
    %1504 = vmatprep.subr.bf16.mxu0 0
    %1505 = vmatpush2.bf16.msra.mxu0 0
    %1506 = vmatprep.subr.bf16.mxu0 0
    %1507 = vmatpush2.bf16.msra.mxu0 0
    %1508 = vmatprep.subr.bf16.mxu0 0
    %1509 = vmatpush2.bf16.msra.mxu0 0
    %1510 = vmatprep.subr.bf16.mxu0 0
    %1511 = vmatpush2.bf16.msra.mxu0 0
    %1512 = vmatprep.subr.bf16.mxu0 0
    %1513 = vmatpush2.bf16.msra.mxu0 0
    %1514 = vmatprep.subr.bf16.mxu0 0
    %1515 = vmatpush2.bf16.msra.mxu0 0
    %1516 = vmatprep.subr.bf16.mxu0 0
    %1517 = vmatpush2.bf16.msra.mxu0 0
    %1518 = vmatprep.subr.bf16.mxu0 0
    %1519 = vmatpush2.bf16.msra.mxu0 0
    %1520 = vmatprep.mubr.bf16.mxu0 0
    %1521 = vmatmul.mubr.bf16.gmra.mxu0 %v1483
    %v1522 = vpop.f32.mrf.mxu0
    %v1523 = vadd.f32 %v1456, %v1522
    %v1524 = vpop.f32.mrf.mxu0
    %v1525 = vpop.f32.mrf.mxu0
    %v1526 = vadd.f32 %v1459, %v1525
    %v1527 = vpop.f32.mrf.mxu0
    %1528 = vmatprep.mubr.bf16.mxu0 0
    %1529 = vmatmul.mubr.bf16.gmra.mxu0 %v1486
    %v1530 = vpop.f32.mrf.mxu0
    %v1531 = vadd.f32 %v1464, %v1530
    %v1532 = vpop.f32.mrf.mxu0
    %v1533 = vpop.f32.mrf.mxu0
    %v1534 = vadd.f32 %v1467, %v1533
    %v1535 = vpop.f32.mrf.mxu0
    %1536 = vdwg.mxu0
    %v1537 = vpack.c.bf16 %v1349, %v1348
    %v1538 = vpack.c.bf16 %v1351, %v1350
    %s1539 = scalar_lea.vmem %s7, 32
    %v1540 = vld [vmem:[%s1539] sm:$0xf]
    %v1541 = vld [vmem:[%s1539 + $0x4] sm:$0xf]
    %v1542 = vld [vmem:[%s1539 + $0x8] sm:$0xf]
    %v1543 = vld [vmem:[%s1539 + $0xc] sm:$0xf]
    %v1548 = vunpack.c.l.b16 %v1540
    %v1549 = vunpack.c.l.b16 %v1541
    %v1550 = vunpack.c.l.b16 %v1542
    %v1551 = vunpack.c.l.b16 %v1543
    %v1552 = vpack.c.b16 %v1549, %v1548
    %v1553 = vpack.c.b16 %v1551, %v1550
    %v1557 = vsel %vm301, %v1537, 0
    %v1560 = vsel %vm301, %v1538, 0
    %1562 = vmatprep.subr.bf16.mxu0 0
    %1563 = vmatpush1.bf16.msra.mxu0 0
    %1564 = vmatprep.subr.bf16.mxu0 0
    %1565 = vmatpush1.bf16.msra.mxu0 0
    %1566 = vmatprep.subr.bf16.mxu0 0
    %1567 = vmatpush1.bf16.msra.mxu0 0
    %1568 = vmatprep.subr.bf16.mxu0 0
    %1569 = vmatpush1.bf16.msra.mxu0 0
    %1570 = vmatprep.subr.bf16.mxu0 0
    %1571 = vmatpush1.bf16.msra.mxu0 0
    %1572 = vmatprep.subr.bf16.mxu0 0
    %1573 = vmatpush1.bf16.msra.mxu0 0
    %1574 = vmatprep.subr.bf16.mxu0 0
    %1575 = vmatpush1.bf16.msra.mxu0 %v1553
    %1576 = vmatprep.subr.bf16.mxu0 0
    %1577 = vmatpush1.bf16.msra.mxu0 %v1552
    %1578 = vmatprep.subr.bf16.mxu0 0
    %1579 = vmatpush2.bf16.msra.mxu0 0
    %1580 = vmatprep.subr.bf16.mxu0 0
    %1581 = vmatpush2.bf16.msra.mxu0 0
    %1582 = vmatprep.subr.bf16.mxu0 0
    %1583 = vmatpush2.bf16.msra.mxu0 0
    %1584 = vmatprep.subr.bf16.mxu0 0
    %1585 = vmatpush2.bf16.msra.mxu0 0
    %1586 = vmatprep.subr.bf16.mxu0 0
    %1587 = vmatpush2.bf16.msra.mxu0 0
    %1588 = vmatprep.subr.bf16.mxu0 0
    %1589 = vmatpush2.bf16.msra.mxu0 0
    %1590 = vmatprep.subr.bf16.mxu0 0
    %1591 = vmatpush2.bf16.msra.mxu0 0
    %1592 = vmatprep.subr.bf16.mxu0 0
    %1593 = vmatpush2.bf16.msra.mxu0 0
    %1594 = vmatprep.mubr.bf16.mxu0 0
    %1595 = vmatmul.mubr.bf16.gmra.mxu0 %v1557
    %v1596 = vpop.f32.mrf.mxu0
    %v1597 = vadd.f32 0.0, %v1596
    %v1598 = vpop.f32.mrf.mxu0
    %v1599 = vpop.f32.mrf.mxu0
    %v1600 = vadd.f32 0.0, %v1599
    %v1601 = vpop.f32.mrf.mxu0
    %1602 = vmatprep.mubr.bf16.mxu0 0
    %1603 = vmatmul.mubr.bf16.gmra.mxu0 %v1560
    %v1604 = vpop.f32.mrf.mxu0
    %v1605 = vadd.f32 0.0, %v1604
    %v1606 = vpop.f32.mrf.mxu0
    %v1607 = vpop.f32.mrf.mxu0
    %v1608 = vadd.f32 0.0, %v1607
    %v1609 = vpop.f32.mrf.mxu0
    %1610 = vdwg.mxu0
    %v1611 = vadd.f32 %v1523, %v1597
    %v1612 = vadd.f32 %v1526, %v1600
    %v1613 = vadd.f32 %v1531, %v1605
    %v1614 = vadd.f32 %v1534, %v1608
    %v1615 = vrot.slane %v1348, 1
    %v1616 = vrot.slane %v1349, 1
    %v1617 = vsel %vm502, %v1615, %v1616
    %v1618 = vrot.slane %v1350, 1
    %v1619 = vsel %vm502, %v1616, %v1618
    %v1620 = vrot.slane %v1351, 1
    %v1621 = vsel %vm502, %v1618, %v1620
    %v1627 = vsel %vm502, %v1620, %v1615
    %v1628 = vsel %vm524, %v1617, 0.0
    %v1629 = vsel %vm525, %v1619, 0.0
    %v1630 = vsel %vm526, %v1621, 0.0
    %v1631 = vsel %vm527, %v1627, 0.0
    %v1632 = vpack.c.bf16 %v1629, %v1628
    %v1633 = vpack.c.bf16 %v1631, %v1630
    %s1634 = scalar_lea.vmem %s7, 48
    %v1635 = vld [vmem:[%s1634] sm:$0xf]
    %v1636 = vld [vmem:[%s1634 + $0x4] sm:$0xf]
    %v1637 = vld [vmem:[%s1634 + $0x8] sm:$0xf]
    %v1638 = vld [vmem:[%s1634 + $0xc] sm:$0xf]
    %v1643 = vunpack.c.l.b16 %v1635
    %v1644 = vunpack.c.l.b16 %v1636
    %v1645 = vunpack.c.l.b16 %v1637
    %v1646 = vunpack.c.l.b16 %v1638
    %v1647 = vpack.c.b16 %v1644, %v1643
    %v1648 = vpack.c.b16 %v1646, %v1645
    %v1652 = vsel %vm301, %v1632, 0
    %v1655 = vsel %vm301, %v1633, 0
    %1657 = vmatprep.subr.bf16.mxu0 0
    %1658 = vmatpush1.bf16.msra.mxu0 0
    %1659 = vmatprep.subr.bf16.mxu0 0
    %1660 = vmatpush1.bf16.msra.mxu0 0
    %1661 = vmatprep.subr.bf16.mxu0 0
    %1662 = vmatpush1.bf16.msra.mxu0 0
    %1663 = vmatprep.subr.bf16.mxu0 0
    %1664 = vmatpush1.bf16.msra.mxu0 0
    %1665 = vmatprep.subr.bf16.mxu0 0
    %1666 = vmatpush1.bf16.msra.mxu0 0
    %1667 = vmatprep.subr.bf16.mxu0 0
    %1668 = vmatpush1.bf16.msra.mxu0 0
    %1669 = vmatprep.subr.bf16.mxu0 0
    %1670 = vmatpush1.bf16.msra.mxu0 %v1648
    %1671 = vmatprep.subr.bf16.mxu0 0
    %1672 = vmatpush1.bf16.msra.mxu0 %v1647
    %1673 = vmatprep.subr.bf16.mxu0 0
    %1674 = vmatpush2.bf16.msra.mxu0 0
    %1675 = vmatprep.subr.bf16.mxu0 0
    %1676 = vmatpush2.bf16.msra.mxu0 0
    %1677 = vmatprep.subr.bf16.mxu0 0
    %1678 = vmatpush2.bf16.msra.mxu0 0
    %1679 = vmatprep.subr.bf16.mxu0 0
    %1680 = vmatpush2.bf16.msra.mxu0 0
    %1681 = vmatprep.subr.bf16.mxu0 0
    %1682 = vmatpush2.bf16.msra.mxu0 0
    %1683 = vmatprep.subr.bf16.mxu0 0
    %1684 = vmatpush2.bf16.msra.mxu0 0
    %1685 = vmatprep.subr.bf16.mxu0 0
    %1686 = vmatpush2.bf16.msra.mxu0 0
    %1687 = vmatprep.subr.bf16.mxu0 0
    %1688 = vmatpush2.bf16.msra.mxu0 0
    %1689 = vmatprep.mubr.bf16.mxu0 0
    %1690 = vmatmul.mubr.bf16.gmra.mxu0 %v1652
    %v1691 = vpop.f32.mrf.mxu0
    %v1692 = vadd.f32 0.0, %v1691
    %v1693 = vpop.f32.mrf.mxu0
    %v1694 = vpop.f32.mrf.mxu0
    %v1695 = vadd.f32 0.0, %v1694
    %v1696 = vpop.f32.mrf.mxu0
    %1697 = vmatprep.mubr.bf16.mxu0 0
    %1698 = vmatmul.mubr.bf16.gmra.mxu0 %v1655
    %v1699 = vpop.f32.mrf.mxu0
    %v1700 = vadd.f32 0.0, %v1699
    %v1701 = vpop.f32.mrf.mxu0
    %v1702 = vpop.f32.mrf.mxu0
    %v1703 = vadd.f32 0.0, %v1702
    %v1704 = vpop.f32.mrf.mxu0
    %1705 = vdwg.mxu0
    %v1706 = vadd.f32 %v1611, %v1692
    %v1707 = vadd.f32 %v1612, %v1695
    %v1708 = vadd.f32 %v1613, %v1700
    %v1709 = vadd.f32 %v1614, %v1703
    %v1710 = vrot.slane %v1348, 2
    %v1711 = vrot.slane %v1349, 2
    %v1712 = vsel %vm610, %v1710, %v1711
    %v1713 = vrot.slane %v1350, 2
    %v1714 = vsel %vm610, %v1711, %v1713
    %v1715 = vrot.slane %v1351, 2
    %v1716 = vsel %vm610, %v1713, %v1715
    %v1722 = vsel %vm610, %v1715, %v1710
    %v1723 = vsel %vm632, %v1712, 0.0
    %v1724 = vsel %vm633, %v1714, 0.0
    %v1725 = vsel %vm634, %v1716, 0.0
    %v1726 = vsel %vm635, %v1722, 0.0
    %v1727 = vpack.c.bf16 %v1724, %v1723
    %v1728 = vpack.c.bf16 %v1726, %v1725
    %s1729 = scalar_lea.vmem %s7, 64
    %v1730 = vld [vmem:[%s1729] sm:$0xf]
    %v1731 = vld [vmem:[%s1729 + $0x4] sm:$0xf]
    %v1732 = vld [vmem:[%s1729 + $0x8] sm:$0xf]
    %v1733 = vld [vmem:[%s1729 + $0xc] sm:$0xf]
    %v1738 = vunpack.c.l.b16 %v1730
    %v1739 = vunpack.c.l.b16 %v1731
    %v1740 = vunpack.c.l.b16 %v1732
    %v1741 = vunpack.c.l.b16 %v1733
    %v1742 = vpack.c.b16 %v1739, %v1738
    %v1743 = vpack.c.b16 %v1741, %v1740
    %v1747 = vsel %vm301, %v1727, 0
    %v1750 = vsel %vm301, %v1728, 0
    %1752 = vmatprep.subr.bf16.mxu0 0
    %1753 = vmatpush1.bf16.msra.mxu0 0
    %1754 = vmatprep.subr.bf16.mxu0 0
    %1755 = vmatpush1.bf16.msra.mxu0 0
    %1756 = vmatprep.subr.bf16.mxu0 0
    %1757 = vmatpush1.bf16.msra.mxu0 0
    %1758 = vmatprep.subr.bf16.mxu0 0
    %1759 = vmatpush1.bf16.msra.mxu0 0
    %1760 = vmatprep.subr.bf16.mxu0 0
    %1761 = vmatpush1.bf16.msra.mxu0 0
    %1762 = vmatprep.subr.bf16.mxu0 0
    %1763 = vmatpush1.bf16.msra.mxu0 0
    %1764 = vmatprep.subr.bf16.mxu0 0
    %1765 = vmatpush1.bf16.msra.mxu0 %v1743
    %1766 = vmatprep.subr.bf16.mxu0 0
    %1767 = vmatpush1.bf16.msra.mxu0 %v1742
    %1768 = vmatprep.subr.bf16.mxu0 0
    %1769 = vmatpush2.bf16.msra.mxu0 0
    %1770 = vmatprep.subr.bf16.mxu0 0
    %1771 = vmatpush2.bf16.msra.mxu0 0
    %1772 = vmatprep.subr.bf16.mxu0 0
    %1773 = vmatpush2.bf16.msra.mxu0 0
    %1774 = vmatprep.subr.bf16.mxu0 0
    %1775 = vmatpush2.bf16.msra.mxu0 0
    %1776 = vmatprep.subr.bf16.mxu0 0
    %1777 = vmatpush2.bf16.msra.mxu0 0
    %1778 = vmatprep.subr.bf16.mxu0 0
    %1779 = vmatpush2.bf16.msra.mxu0 0
    %1780 = vmatprep.subr.bf16.mxu0 0
    %1781 = vmatpush2.bf16.msra.mxu0 0
    %1782 = vmatprep.subr.bf16.mxu0 0
    %1783 = vmatpush2.bf16.msra.mxu0 0
    %1784 = vmatprep.mubr.bf16.mxu0 0
    %1785 = vmatmul.mubr.bf16.gmra.mxu0 %v1747
    %v1786 = vpop.f32.mrf.mxu0
    %v1787 = vadd.f32 0.0, %v1786
    %v1788 = vpop.f32.mrf.mxu0
    %v1789 = vpop.f32.mrf.mxu0
    %v1790 = vadd.f32 0.0, %v1789
    %v1791 = vpop.f32.mrf.mxu0
    %1792 = vmatprep.mubr.bf16.mxu0 0
    %1793 = vmatmul.mubr.bf16.gmra.mxu0 %v1750
    %v1794 = vpop.f32.mrf.mxu0
    %v1795 = vadd.f32 0.0, %v1794
    %v1796 = vpop.f32.mrf.mxu0
    %v1797 = vpop.f32.mrf.mxu0
    %v1798 = vadd.f32 0.0, %v1797
    %v1799 = vpop.f32.mrf.mxu0
    %1800 = vdwg.mxu0
    %v1801 = vadd.f32 %v1706, %v1787
    %v1802 = vadd.f32 %v1707, %v1790
    %v1803 = vadd.f32 %v1708, %v1795
    %v1804 = vadd.f32 %v1709, %v1798
    %v1805 = vadd.f32 %v1801, %v809
    %v1806 = vadd.f32 %v1802, %v812
    %v1807 = vadd.f32 %v1803, %v817
    %v1808 = vadd.f32 %v1804, %v820
    %v1809 = vtanh.pop %v1805
    %v1810 = vtanh.pop %v1806
    %v1811 = vtanh.pop %v1807
    %v1812 = vtanh.pop %v1808
    %v1813 = vpack.c.bf16 %v1810, %v1809
    %v1814 = vpack.c.bf16 %v1812, %v1811
    %v1815 = vld [vmem:[%s8] sm:$0xf]
    %v1816 = vld [vmem:[%s8 + $0x4] sm:$0xf]
    %v1817 = vld [vmem:[%s8 + $0x8] sm:$0xf]
    %v1818 = vld [vmem:[%s8 + $0xc] sm:$0xf]
    %v1823 = vunpack.c.l.b16 %v1815
    %v1824 = vunpack.c.l.b16 %v1816
    %v1825 = vunpack.c.l.b16 %v1817
    %v1826 = vunpack.c.l.b16 %v1818
    %v1827 = vpack.c.b16 %v1824, %v1823
    %v1828 = vpack.c.b16 %v1826, %v1825
    %v1832 = vsel %vm301, %v1813, 0
    %v1835 = vsel %vm301, %v1814, 0
    %1837 = vmatprep.subr.bf16.mxu0 0
    %1838 = vmatpush1.bf16.msra.mxu0 0
    %1839 = vmatprep.subr.bf16.mxu0 0
    %1840 = vmatpush1.bf16.msra.mxu0 0
    %1841 = vmatprep.subr.bf16.mxu0 0
    %1842 = vmatpush1.bf16.msra.mxu0 0
    %1843 = vmatprep.subr.bf16.mxu0 0
    %1844 = vmatpush1.bf16.msra.mxu0 0
    %1845 = vmatprep.subr.bf16.mxu0 0
    %1846 = vmatpush1.bf16.msra.mxu0 0
    %1847 = vmatprep.subr.bf16.mxu0 0
    %1848 = vmatpush1.bf16.msra.mxu0 0
    %1849 = vmatprep.subr.bf16.mxu0 0
    %1850 = vmatpush1.bf16.msra.mxu0 %v1828
    %1851 = vmatprep.subr.bf16.mxu0 0
    %1852 = vmatpush1.bf16.msra.mxu0 %v1827
    %1853 = vmatprep.subr.bf16.mxu0 0
    %1854 = vmatpush2.bf16.msra.mxu0 0
    %1855 = vmatprep.subr.bf16.mxu0 0
    %1856 = vmatpush2.bf16.msra.mxu0 0
    %1857 = vmatprep.subr.bf16.mxu0 0
    %1858 = vmatpush2.bf16.msra.mxu0 0
    %1859 = vmatprep.subr.bf16.mxu0 0
    %1860 = vmatpush2.bf16.msra.mxu0 0
    %1861 = vmatprep.subr.bf16.mxu0 0
    %1862 = vmatpush2.bf16.msra.mxu0 0
    %1863 = vmatprep.subr.bf16.mxu0 0
    %1864 = vmatpush2.bf16.msra.mxu0 0
    %1865 = vmatprep.subr.bf16.mxu0 0
    %1866 = vmatpush2.bf16.msra.mxu0 0
    %1867 = vmatprep.subr.bf16.mxu0 0
    %1868 = vmatpush2.bf16.msra.mxu0 0
    %1869 = vmatprep.mubr.bf16.mxu0 0
    %1870 = vmatmul.mubr.bf16.gmra.mxu0 %v1832
    %v1871 = vpop.f32.mrf.mxu0
    %v1872 = vadd.f32 0.0, %v1871
    %v1873 = vpop.f32.mrf.mxu0
    %v1874 = vpop.f32.mrf.mxu0
    %v1875 = vadd.f32 0.0, %v1874
    %v1876 = vpop.f32.mrf.mxu0
    %1877 = vmatprep.mubr.bf16.mxu0 0
    %1878 = vmatmul.mubr.bf16.gmra.mxu0 %v1835
    %v1879 = vpop.f32.mrf.mxu0
    %v1880 = vadd.f32 0.0, %v1879
    %v1881 = vpop.f32.mrf.mxu0
    %v1882 = vpop.f32.mrf.mxu0
    %v1883 = vadd.f32 0.0, %v1882
    %v1884 = vpop.f32.mrf.mxu0
    %1885 = vdwg.mxu0
    %vm1886 = vcmask 64512
    %v1887 = vsel %vm1886, %v1872, -inf
    %v1888 = vsel %vm1886, %v1875, -inf
    %v1889 = vmax.f32 %v1887, %v1888
    %v1890 = vrot.slane %v1889, 4
    %v1891 = vmax.f32 %v1889, %v1890
    %v1892 = vrot.slane %v1891, 2
    %v1893 = vmax.f32 %v1891, %v1892
    %v1894 = vrot.slane %v1893, 1
    %v1895 = vmax.f32 %v1893, %v1894
    %v1896 = vsel %vm1886, %v1880, -inf
    %v1897 = vsel %vm1886, %v1883, -inf
    %v1898 = vmax.f32 %v1896, %v1897
    %v1899 = vrot.slane %v1898, 4
    %v1900 = vmax.f32 %v1898, %v1899
    %v1901 = vrot.slane %v1900, 2
    %v1902 = vmax.f32 %v1900, %v1901
    %v1903 = vrot.slane %v1902, 1
    %v1904 = vmax.f32 %v1902, %v1903
    %v1905 = vsub.f32 %v1872, %v1895
    %v1906 = vsub.f32 %v1875, %v1895
    %v1907 = vsub.f32 %v1880, %v1904
    %v1908 = vsub.f32 %v1883, %v1904
    %v1909 = vmul.f32 %v1905, 1.442695
    %v1910 = vpow.pop %v1909
    %v1911 = vmul.f32 %v1906, 1.442695
    %v1912 = vpow.pop %v1911
    %v1913 = vmul.f32 %v1907, 1.442695
    %v1914 = vpow.pop %v1913
    %v1915 = vmul.f32 %v1908, 1.442695
    %v1916 = vpow.pop %v1915
    %1921 = vrot.lane.b32.xlu0 %v1872, 120
    %v1922 = vpop.permute.xlu0 %1921
    %1923 = vrot.lane.b32.xlu0 %v1875, 120
    %v1924 = vpop.permute.xlu0 %1923
    %1925 = vrot.lane.b32.xlu0 %v1880, 120
    %v1926 = vpop.permute.xlu0 %1925
    %1927 = vrot.lane.b32.xlu0 %v1883, 120
    %v1928 = vpop.permute.xlu0 %1927
    %v1933 = vmul.f32 %v1910, %v1922
    %v1934 = vmul.f32 %v1912, %v1924
    %v1935 = vmul.f32 %v1914, %v1926
    %v1936 = vmul.f32 %v1916, %v1928
    %v1937 = vsel %vm1886, %v1933, 0.0
    %v1938 = vsel %vm1886, %v1934, 0.0
    %v1939 = vadd.f32 %v1937, %v1938
    %v1940 = vrot.slane %v1939, 4
    %v1941 = vadd.f32 %v1939, %v1940
    %v1942 = vrot.slane %v1941, 2
    %v1943 = vadd.f32 %v1941, %v1942
    %v1944 = vrot.slane %v1943, 1
    %v1945 = vadd.f32 %v1943, %v1944
    %v1946 = vsel %vm1886, %v1935, 0.0
    %v1947 = vsel %vm1886, %v1936, 0.0
    %v1948 = vadd.f32 %v1946, %v1947
    %v1949 = vrot.slane %v1948, 4
    %v1950 = vadd.f32 %v1948, %v1949
    %v1951 = vrot.slane %v1950, 2
    %v1952 = vadd.f32 %v1950, %v1951
    %v1953 = vrot.slane %v1952, 1
    %v1954 = vadd.f32 %v1952, %v1953
    %v1955 = vsel %vm1886, %v1910, 0.0
    %v1956 = vsel %vm1886, %v1912, 0.0
    %v1957 = vadd.f32 %v1955, %v1956
    %v1958 = vrot.slane %v1957, 4
    %v1959 = vadd.f32 %v1957, %v1958
    %v1960 = vrot.slane %v1959, 2
    %v1961 = vadd.f32 %v1959, %v1960
    %v1962 = vrot.slane %v1961, 1
    %v1963 = vadd.f32 %v1961, %v1962
    %v1964 = vsel %vm1886, %v1914, 0.0
    %v1965 = vsel %vm1886, %v1916, 0.0
    %v1966 = vadd.f32 %v1964, %v1965
    %v1967 = vrot.slane %v1966, 4
    %v1968 = vadd.f32 %v1966, %v1967
    %v1969 = vrot.slane %v1968, 2
    %v1970 = vadd.f32 %v1968, %v1969
    %v1971 = vrot.slane %v1970, 1
    %v1972 = vadd.f32 %v1970, %v1971
    %v1973 = vrcp.pop %v1963
    %v1974 = vmul.f32 %v1945, %v1973
    %v1975 = vrcp.pop %v1972
    %v1976 = vmul.f32 %v1954, %v1975
    %v1977 = vld [vmem:[%s9] sm:$0x1]
    %v1979 = vlaneseq
    %v1980 = vshrl.u32 %v1979, 7
    %v1981 = vsub.s32 0, %v1980
    %v1982 = vrot.slane %v1977, %v1981
    %v1984 = vadd.f32 %v1974, %v1982
    %v1985 = vadd.f32 %v1976, %v1982
    %v1988 = vrot.slane %v1985, 7
    %vm1989 = vcmask 1041409
    %v1990 = vsel %vm1989, %v1988, %v1984
    %vm1992 = vcmask 58368
    %1993 = vst.msk [vmem:[#allocation2] sm:$0x3] %vm1992, %v1990
    %v1994 = vld [vmem:[%s1] sm:$0x3]
    %v1995 = vmax.f32 %v1984, 0.0
    %v1996 = vmax.f32 %v1985, 0.0
    %v1998 = vrot.slane %v1994, 1
    %v2001 = vmul.f32 %v1984, %v1994
    %v2002 = vmul.f32 %v1985, %v1998
    %v2003 = vsub.f32 %v1995, %v2001
    %v2004 = vsub.f32 %v1996, %v2002
    %v2005 = vand.u32 2147483647, %v1984
    %v2006 = vand.u32 2147483647, %v1985
    %v2007 = vsub.f32 0.0, %v2005
    %v2008 = vsub.f32 0.0, %v2006
    %v2009 = vmul.f32 %v2007, 1.442695
    %v2010 = vpow.pop %v2009
    %v2011 = vmul.f32 %v2008, 1.442695
    %v2012 = vpow.pop %v2011
    %v2013 = vadd.f32 %v2010, 1.0
    %v2014 = vadd.f32 %v2012, 1.0
    %v2015 = vlog2.pop %v2013
    %v2016 = vmul.f32 %v2015, 0.6931472
    %v2017 = vlog2.pop %v2014
    %v2018 = vmul.f32 %v2017, 0.6931472
    %v2019 = vadd.f32 %v2003, %v2016
    %v2020 = vadd.f32 %v2004, %v2018
    %v2023 = vrot.slane %v2020, 7
    %v2024 = vsel %vm1989, %v2023, %v2019
    %v2026 = vsel %vm1992, %v2024, 0.0
    %2027 = vadd.xlane.f32.xlu0 %v2026
    %v2028 = vpop.xlane.xlu0 %2027
    %v2029 = vrot.slane %v2028, 4
    %v2030 = vadd.f32 %v2028, %v2029
    %v2031 = vrot.slane %v2030, 2
    %v2032 = vadd.f32 %v2030, %v2031
    %v2033 = vrot.slane %v2032, 1
    %v2034 = vadd.f32 %v2032, %v2033
    %s2035 = vtos %v2034
    %v2036 = vrcp.pop 16.0
    %s2037 = vtos %v2036
    %s2038 = smul.f32 %s2035, %s2037
    %v2039 = vstv %s2038
    %vm2040 = vcmask 0
    %2041 = vst.msk [vmem:[#allocation4] sm:$0x1] %vm2040, %v2039
    // Predicated region
    $region42: #{multirescnn_forward.1} parent=1 // pred_check
      _
    $region43: #{multirescnn_forward.1} parent=1 // pred_check_branch
      %2043 = sbr.rel (0) target = $region45
    $region44: #{multirescnn_forward.1} parent=1 // pred_region
      %s2045 = ssub.s32 32, 32
      %2046 = vsyncadd [#allocation3], %s2045
      %s2048 = sshll.u32 [#allocation2], 4
      %s2049 = int_to_ptr.vmem [resolvable:$true] %s2048
      %2051 = dma.vmem_to_hbm [thread:$0]  %s2049, 32, %s10, [#allocation3]
    $region45: #{multirescnn_forward.1} parent=1 // pred_fallthru
      _
    // Predicated region
    $region46: #{multirescnn_forward.1} parent=1 // pred_check
      _
    $region47: #{multirescnn_forward.1} parent=1 // pred_check_branch
      %2053 = sbr.rel (0) target = $region49
    $region48: #{multirescnn_forward.1} parent=1 // pred_region
      %s2055 = ssub.s32 16, 16
      %2056 = vsyncadd [#allocation5], %s2055
      %s2058 = sshll.u32 [#allocation4], 4
      %s2059 = int_to_ptr.vmem [resolvable:$true] %s2058
      %2061 = dma.vmem_to_hbm [thread:$0]  %s2059, 16, %s11, [#allocation5]
    $region49: #{multirescnn_forward.1} parent=1 // pred_fallthru
      _
    // Predicated region
    $region50: #{multirescnn_forward.1} parent=1 // pred_check
      _
    $region51: #{multirescnn_forward.1} parent=1 // pred_check_branch
      %2063 = sbr.rel (0) target = $region53
    $region52: #{multirescnn_forward.1} parent=1 // pred_region
      %2064 = dma.done [#allocation3], 32
    $region53: #{multirescnn_forward.1} parent=1 // pred_fallthru
      _
    // Predicated region
    $region54: #{multirescnn_forward.1} parent=1 // pred_check
      _
    $region55: #{multirescnn_forward.1} parent=1 // pred_check_branch
      %2066 = sbr.rel (0) target = $region57
    $region56: #{multirescnn_forward.1} parent=1 // pred_region
      %2067 = dma.done [#allocation5], 16
    $region57: #{multirescnn_forward.1} parent=1 // pred_fallthru
      _
    %2068 = vsyncpa [#allocation3], 1
    %2069 = vsyncpa [#allocation5], 1

</llo_original>
